<compile_context>
chip_gen: v5e
topology: v5e:2x2
jax: 0.10.0
libtpu: 0.0.40
codegen_flags: <defaults>
</compile_context>

<pallas_src>
import jax
import jax.numpy as jnp
from jax import lax
from jax.experimental import pallas as pl
from jax.experimental.pallas import tpu as pltpu


def _gkt_mha_kernel(q_ref, k_ref, v_ref, a_ref, wv_ref, o_ref):
    # q_ref/k_ref/v_ref: (N, C, T) VMEM tiles (channels-first, T on lanes)
    # a_ref:  (C, C)  = Wq^T @ Wk   (fused q/k projection)
    # wv_ref: (C, C)  = Wv
    # o_ref:  (C, T)  lane-dense output tile
    n_views, c, t = q_ref.shape

    q = q_ref[...]
    k = k_ref[...]
    v = v_ref[...]
    a = a_ref[...]
    wv = wv_ref[...]

    # kA[n, c, t] = sum_d A[c, d] * k[n, d, t]   (batched over views)
    ka = lax.dot_general(
        jnp.broadcast_to(a, (n_views, c, c)), k,
        dimension_numbers=(((2,), (1,)), ((0,), (0,))),
        preferred_element_type=jnp.float32)

    # attention logits per (view, location): att[n, t] = sum_c q[n,c,t]*kA[n,c,t]
    att = jnp.sum(q.astype(jnp.float32) * ka, axis=1)          # (N, T)

    # numerically stable softmax over the view axis (axis 0), unnormalized
    m = jnp.max(att, axis=0, keepdims=True)                     # (1, T)
    e = jnp.exp(att - m)                                        # (N, T)
    denom = jnp.sum(e, axis=0, keepdims=True)                   # (1, T)

    # attention-weighted sum of *raw* v over views (Wv projection deferred)
    weighted = jnp.sum(e[:, None, :] * v.astype(jnp.float32), axis=0)  # (C, T)

    # deferred v projection: one (C,C)@(C,T) MXU matmul, then deferred
    # normalization with an *exact* reciprocal of the (1, T) denominator.
    out = jnp.dot(wv, weighted, preferred_element_type=jnp.float32)    # (C, T)
    out = out * pl.reciprocal(denom)                            # exact divide
    o_ref[...] = out.astype(o_ref.dtype)


def _pick_tile(hw, cap=2048):
    """Largest multiple of 128 dividing hw (capped by VMEM budget), keeping
    >= 2 grid steps when hw allows it (megacore: 2 TensorCores)."""
    if hw % 128 != 0:
        return hw                      # single full-extent block
    best = 128
    limit = min(max(hw // 2, 128), cap)
    for t in range(128, limit + 1, 128):
        if hw % t == 0:
            best = t
    return best


def gkt_multi_head_attention(q, k, v, wq, wk, wv, *, tile=None):
    """q, k, v: (N, C, H, W) (NCHW, like PyTorch).
    wq/wk/wv: (C_out, C_in) 1x1 conv weights (no bias).
    Returns (1, C, H, W)."""
    N, C, H, W = q.shape
    HW = H * W

    # zero-copy reshapes: NCHW -> (N, C, H*W); no HBM transposes.
    qf = q.reshape(N, C, HW)
    kf = k.reshape(N, C, HW)
    vf = v.reshape(N, C, HW)

    # fused q/k projection:  att = q^T (Wq^T Wk) k  per (view, location)
    a = jnp.dot(wq.T, wk, preferred_element_type=jnp.float32).astype(q.dtype)
    wv = wv.astype(q.dtype)

    if tile is None:
        tile = _pick_tile(HW)
    assert HW % tile == 0, "spatial size must be divisible by tile"
    grid = (HW // tile,)

    out_flat = pl.pallas_call(
        _gkt_mha_kernel,
        out_shape=jax.ShapeDtypeStruct((C, HW), q.dtype),
        grid_spec=pltpu.PrefetchScalarGridSpec(
            num_scalar_prefetch=0,
            grid=grid,
            in_specs=[
                pl.BlockSpec((N, C, tile), lambda i: (0, 0, i)),
                pl.BlockSpec((N, C, tile), lambda i: (0, 0, i)),
                pl.BlockSpec((N, C, tile), lambda i: (0, 0, i)),
                pl.BlockSpec((C, C), lambda i: (0, 0)),
                pl.BlockSpec((C, C), lambda i: (0, 0)),
            ],
            out_specs=pl.BlockSpec((C, tile), lambda i: (0, i)),
        ),
        compiler_params=pltpu.CompilerParams(
            dimension_semantics=("parallel",),
            vmem_limit_bytes=32 * 1024 * 1024,
        ),
    )(qf, kf, vf, a, wv)

    # (C, HW) -> (1, C, H, W): contiguity-preserving reshape, no transpose.
    return out_flat.reshape(1, C, H, W)


def _reference(q, k, v, wq, wk, wv):
    """Pure-JAX reference mirroring the PyTorch forward (for verification)."""
    def conv1x1(x, w):  # NCHW, w: (Cout, Cin)
        return jnp.einsum("nchw,dc->ndhw", x, w)
    qp, kp, vp = conv1x1(q, wq), conv1x1(k, wk), conv1x1(v, wv)
    att = jnp.sum(qp * kp, axis=1, keepdims=True)           # (N,1,H,W)
    att = jax.nn.softmax(att, axis=0)                        # softmax over dim 0
    x = att * vp
    return jnp.sum(x, axis=0, keepdims=True)                 # (1,C,H,W)


if __name__ == "__main__":
    # Small shapes: N=8 views, embed_dims=32, spatial 16x16 (HW=256 -> tile=128,
    # 2 parallel grid steps).
    N, C, H, W = 8, 32, 16, 16
    key = jax.random.PRNGKey(0)
    kq, kk, kv, kwq, kwk, kwv = jax.random.split(key, 6)

    q = jax.random.normal(kq, (N, C, H, W), dtype=jnp.float32)
    k = jax.random.normal(kk, (N, C, H, W), dtype=jnp.float32)
    v = jax.random.normal(kv, (N, C, H, W), dtype=jnp.float32)

    # Deterministic 1x1 conv weights (Cout, Cin), no bias.
    scale = 1.0 / jnp.sqrt(C).astype(jnp.float32)
    wq = jax.random.normal(kwq, (C, C), dtype=jnp.float32) * scale
    wk = jax.random.normal(kwk, (C, C), dtype=jnp.float32) * scale
    wv = jax.random.normal(kwv, (C, C), dtype=jnp.float32) * scale

    # TODO(synk): nn.Dropout(p=0.0) and the unused `nhead` arg are identity /
    # no-ops in this forward and are intentionally not modeled.
    fn = jax.jit(gkt_multi_head_attention)
    out = jax.block_until_ready(fn(q, k, v, wq, wk, wv))
    ref = jax.block_until_ready(_reference(q, k, v, wq, wk, wv))

    assert out.shape == (1, C, H, W), out.shape
    err = float(jnp.max(jnp.abs(out - ref)))
    assert err < 1e-3, err

    print("KERNEL_OK")
</pallas_src>

<mosaic_0001>
module attributes {stable_mosaic.version = 11 : i64} {
  func.func @_gkt_mha_kernel(%arg0: i32, %arg1: memref<8x32x128xf32, #tpu.memory_space<vmem>>, %arg2: memref<8x32x128xf32, #tpu.memory_space<vmem>>, %arg3: memref<8x32x128xf32, #tpu.memory_space<vmem>>, %arg4: memref<32x32xf32, #tpu.memory_space<vmem>>, %arg5: memref<32x32xf32, #tpu.memory_space<vmem>>, %arg6: memref<32x128xf32, #tpu.memory_space<vmem>>) attributes {dimension_semantics = [#tpu.dimension_semantics<parallel>], iteration_bounds = array<i64: 2>, scalar_prefetch = 0 : i64, scratch_operands = 0 : i64, tpu.core_type = #tpu.core_type<tc>, window_params = [{transform_indices = @transform_0, window_bounds = array<i64: 8, 32, 128>}, {transform_indices = @transform_1, window_bounds = array<i64: 8, 32, 128>}, {transform_indices = @transform_2, window_bounds = array<i64: 8, 32, 128>}, {pipeline_mode = #tpu.pipeline_mode<synchronous>, transform_indices = @transform_3, window_bounds = array<i64: 32, 32>}, {pipeline_mode = #tpu.pipeline_mode<synchronous>, transform_indices = @transform_4, window_bounds = array<i64: 32, 32>}, {transform_indices = @transform_5, window_bounds = array<i64: 32, 128>}]} {
    %c0 = arith.constant 0 : index
    %c0_0 = arith.constant 0 : index
    %c0_1 = arith.constant 0 : index
    %0 = vector.load %arg1[%c0, %c0_0, %c0_1] : memref<8x32x128xf32, #tpu.memory_space<vmem>>, vector<8x32x128xf32>
    %c0_2 = arith.constant 0 : index
    %c0_3 = arith.constant 0 : index
    %c0_4 = arith.constant 0 : index
    %1 = vector.load %arg2[%c0_2, %c0_3, %c0_4] : memref<8x32x128xf32, #tpu.memory_space<vmem>>, vector<8x32x128xf32>
    %c0_5 = arith.constant 0 : index
    %c0_6 = arith.constant 0 : index
    %c0_7 = arith.constant 0 : index
    %2 = vector.load %arg3[%c0_5, %c0_6, %c0_7] : memref<8x32x128xf32, #tpu.memory_space<vmem>>, vector<8x32x128xf32>
    %c0_8 = arith.constant 0 : index
    %c0_9 = arith.constant 0 : index
    %3 = vector.load %arg4[%c0_8, %c0_9] : memref<32x32xf32, #tpu.memory_space<vmem>>, vector<32x32xf32>
    %c0_10 = arith.constant 0 : index
    %c0_11 = arith.constant 0 : index
    %4 = vector.load %arg5[%c0_10, %c0_11] : memref<32x32xf32, #tpu.memory_space<vmem>>, vector<32x32xf32>
    %5 = vector.shape_cast %3 : vector<32x32xf32> to vector<1x32x32xf32>
    %6 = vector.broadcast %5 : vector<1x32x32xf32> to vector<8x32x32xf32>
    %cst = arith.constant dense<0.000000e+00> : vector<8x32x128xf32>
    %7 = tpu.matmul %6, %1, %cst {dimension_numbers = #tpu.dot_dimension_numbers<[2], [1], [1], [2], [0, 0, 0, 1, 1, 2], [0], [0]>} : vector<8x32x32xf32>, vector<8x32x128xf32>, vector<8x32x128xf32> -> vector<8x32x128xf32>
    %8 = arith.mulf %0, %7 : vector<8x32x128xf32>
    %cst_12 = arith.constant dense<0.000000e+00> : vector<8x128xf32>
    %9 = vector.multi_reduction <add>, %8, %cst_12 [1] : vector<8x32x128xf32> to vector<8x128xf32>
    %cst_13 = arith.constant dense<0xFF800000> : vector<128xf32>
    %10 = vector.multi_reduction <maximumf>, %9, %cst_13 [0] : vector<8x128xf32> to vector<128xf32>
    %11 = vector.shape_cast %10 : vector<128xf32> to vector<1x128xf32>
    %12 = vector.broadcast %11 : vector<1x128xf32> to vector<8x128xf32>
    %13 = arith.subf %9, %12 : vector<8x128xf32>
    %14 = math.exp %13 : vector<8x128xf32>
    %cst_14 = arith.constant dense<0.000000e+00> : vector<128xf32>
    %15 = vector.multi_reduction <add>, %14, %cst_14 [0] : vector<8x128xf32> to vector<128xf32>
    %16 = vector.shape_cast %15 : vector<128xf32> to vector<1x128xf32>
    %17 = vector.shape_cast %14 : vector<8x128xf32> to vector<8x1x128xf32>
    %18 = vector.broadcast %17 : vector<8x1x128xf32> to vector<8x32x128xf32>
    %19 = arith.mulf %18, %2 : vector<8x32x128xf32>
    %cst_15 = arith.constant dense<0.000000e+00> : vector<32x128xf32>
    %20 = vector.multi_reduction <add>, %19, %cst_15 [0] : vector<8x32x128xf32> to vector<32x128xf32>
    %cst_16 = arith.constant dense<0.000000e+00> : vector<32x128xf32>
    %21 = tpu.matmul %4, %20, %cst_16 {dimension_numbers = #tpu.dot_dimension_numbers<[1], [0], [0], [1], [0, 0, 1, 1], [], []>} : vector<32x32xf32>, vector<32x128xf32>, vector<32x128xf32> -> vector<32x128xf32>
    %22 = tpu.reciprocal %16 : vector<1x128xf32> -> vector<1x128xf32>
    %23 = vector.broadcast %22 : vector<1x128xf32> to vector<32x128xf32>
    %24 = arith.mulf %21, %23 : vector<32x128xf32>
    %c0_17 = arith.constant 0 : index
    %c0_18 = arith.constant 0 : index
    %25 = vector.load %arg6[%c0_17, %c0_18] : memref<32x128xf32, #tpu.memory_space<vmem>>, vector<32x128xf32>
    tpu.vector_store %arg6[%c0_17, %c0_18], %24 {strides = array<i32>} : memref<32x128xf32, #tpu.memory_space<vmem>>, vector<32x128xf32>,
    return
  }
  func.func @transform_0(%arg0: i32) -> (i32, i32, i32) {
    %c0_i32 = arith.constant 0 : i32
    %c0_i32_0 = arith.constant 0 : i32
    %c0_i32_1 = arith.constant 0 : i32
    return %c0_i32, %c0_i32_0, %arg0 : i32, i32, i32
  }
  func.func @transform_1(%arg0: i32) -> (i32, i32, i32) {
    %c0_i32 = arith.constant 0 : i32
    %c0_i32_0 = arith.constant 0 : i32
    %c0_i32_1 = arith.constant 0 : i32
    return %c0_i32, %c0_i32_0, %arg0 : i32, i32, i32
  }
  func.func @transform_2(%arg0: i32) -> (i32, i32, i32) {
    %c0_i32 = arith.constant 0 : i32
    %c0_i32_0 = arith.constant 0 : i32
    %c0_i32_1 = arith.constant 0 : i32
    return %c0_i32, %c0_i32_0, %arg0 : i32, i32, i32
  }
  func.func @transform_3(%arg0: i32) -> (i32, i32) {
    %c0_i32 = arith.constant 0 : i32
    %c0_i32_0 = arith.constant 0 : i32
    %c0_i32_1 = arith.constant 0 : i32
    return %c0_i32, %c0_i32_0 : i32, i32
  }
  func.func @transform_4(%arg0: i32) -> (i32, i32) {
    %c0_i32 = arith.constant 0 : i32
    %c0_i32_0 = arith.constant 0 : i32
    %c0_i32_1 = arith.constant 0 : i32
    return %c0_i32, %c0_i32_0 : i32, i32
  }
  func.func @transform_5(%arg0: i32) -> (i32, i32) {
    %c0_i32 = arith.constant 0 : i32
    %c0_i32_0 = arith.constant 0 : i32
    return %c0_i32, %arg0 : i32, i32
  }
}

</mosaic_0001>

<llo_original>
// kernel: gkt_multi_head_attention.1
$region0: #{gkt_multi_head_attention.1}
  #allocation0 [shape = 'u32[]', space=smem, size = 0x4, offset = 0x4, fixed_abs, tag = 'smem constant byte address 0x4 - core index']
  #allocation1 [shape = 'u32[72,128]{1,0:T(1,128)}', space=vmem, size = 0x9000, scoped, tag = 'internal scratch']
  %s0 = inlined_call_operand.vmem [shape: f32[8,32,256], index: 0, kind: input, shape index: {}]
  %s1 = inlined_call_operand.vmem [shape: f32[8,32,256], index: 1, kind: input, shape index: {}]
  %s2 = inlined_call_operand.vmem [shape: f32[8,32,256], index: 2, kind: input, shape index: {}]
  %s3 = inlined_call_operand.vmem [shape: f32[32,32], index: 3, kind: input, shape index: {}]
  %s4 = inlined_call_operand.vmem [shape: f32[32,32], index: 4, kind: input, shape index: {}]
  %s5 = inlined_call_operand.vmem [shape: f32[32,256], index: 5, kind: output, shape index: {}]
  %s6 = sld [smem:[#allocation0]]
  $region201: #{gkt_multi_head_attention.1} parent=0
    _
  %s8 = ssub.s32 1, %s6
  %s9 = scalar_select 0, %s8, %s6
  $region1: #{gkt_multi_head_attention.1} parent=0
    #allocation2 [shape = 'u8[262144]{0}', space=vmem, size = 0x40000, scoped, tag = 'input window, operand 0']
    #allocation3 [shape = 'u8[262144]{0}', space=vmem, size = 0x40000, scoped, tag = 'input window, operand 1']
    #allocation4 [shape = 'u8[262144]{0}', space=vmem, size = 0x40000, scoped, tag = 'input window, operand 2']
    #allocation5 [shape = 'u8[32768]{0}', space=vmem, size = 0x8000, scoped, tag = 'output window, operand 0']
    loop: start=0, step=1, limit=4
    $region2: #{gkt_multi_head_attention.1} parent=1 // loop_pre_header
      _
    $region3: #{gkt_multi_head_attention.1} parent=1 // loop_header
      %s11 = sphi 0, %s15
      %p12 = scmp.ge.s32.totalorder %s11, 4
      %s21 = sphi 0, %s23
      %s24 = sphi 0, %s21
      %s25 = sphi 0, %s24
      %s41 = sphi 0, %s25
      %s47 = sphi 0, %s49
      %s50 = sphi 0, %s47
      %s51 = sphi 0, %s50
      %s67 = sphi 0, %s51
      %s73 = sphi 0, %s75
      %s76 = sphi 0, %s73
      %s77 = sphi 0, %s76
      %s93 = sphi 0, %s77
      %s97 = sphi 0, %s97
      %s99 = sphi 0, %s97
      %s100 = sphi 0, %s99
      %s114 = sphi 0, %s100
      %s118 = sphi 0, %s118
      %s120 = sphi 0, %s118
      %s121 = sphi 0, %s120
      %s135 = sphi 0, %s121
      %s141 = sphi 0, %s143
      %s144 = sphi 0, %s141
      %s145 = sphi 0, %s144
      %s161 = sphi 0, %s145
    $region4: #{gkt_multi_head_attention.1} parent=1 // loop_header_branch
      %14 = sbr.rel (%p12) target = $region8
    $region5: #{gkt_multi_head_attention.1} parent=1 // loop_body
      %s16 = ssub.s32 %s11, 1
      %s17 = ssub.s32 %s11, 2
      %s18 = sadd.s32 %s11, 1
      %s19 = ssub.s32 %s11, %s18
      %p20 = scmp.eq.s32.totalorder %s19, 0
      %s22 = sadd.s32 %s21, 1
      %s23 = scalar_select %p20, %s21, %s22
      %p26 = pneg %p20
      %p27 = scmp.eq.s32.totalorder %s11, 1
      %p28 = por %p26, %p27
      %p29 = scmp.ne.s32.totalorder %s21, %s24
      %p30 = scmp.eq.s32.totalorder %s11, 0
      %p31 = por %p29, %p30
      %p32 = scmp.ne.s32.totalorder %s21, %s24
      %p33 = scmp.eq.s32.totalorder %s16, 1
      %p34 = por %p32, %p33
      %p35 = scmp.ne.s32.totalorder %s24, %s25
      %p36 = scmp.eq.s32.totalorder %s16, 0
      %p37 = por %p35, %p36
      %p38 = scmp.ne.s32.totalorder %s24, %s25
      %p39 = scmp.eq.s32.totalorder %s17, 1
      %p40 = por %p38, %p39
      %p42 = scmp.ne.s32.totalorder %s25, %s41
      %p43 = scmp.eq.s32.totalorder %s17, 0
      %p44 = por %p42, %p43
      %s45 = ssub.s32 %s11, %s18
      %p46 = scmp.eq.s32.totalorder %s45, 0
      %s48 = sadd.s32 %s47, 1
      %s49 = scalar_select %p46, %s47, %s48
      %p52 = pneg %p46
      %p53 = scmp.eq.s32.totalorder %s11, 1
      %p54 = por %p52, %p53
      %p55 = scmp.ne.s32.totalorder %s47, %s50
      %p56 = scmp.eq.s32.totalorder %s11, 0
      %p57 = por %p55, %p56
      %p58 = scmp.ne.s32.totalorder %s47, %s50
      %p59 = scmp.eq.s32.totalorder %s16, 1
      %p60 = por %p58, %p59
      %p61 = scmp.ne.s32.totalorder %s50, %s51
      %p62 = scmp.eq.s32.totalorder %s16, 0
      %p63 = por %p61, %p62
      %p64 = scmp.ne.s32.totalorder %s50, %s51
      %p65 = scmp.eq.s32.totalorder %s17, 1
      %p66 = por %p64, %p65
      %p68 = scmp.ne.s32.totalorder %s51, %s67
      %p69 = scmp.eq.s32.totalorder %s17, 0
      %p70 = por %p68, %p69
      %s71 = ssub.s32 %s11, %s18
      %p72 = scmp.eq.s32.totalorder %s71, 0
      %s74 = sadd.s32 %s73, 1
      %s75 = scalar_select %p72, %s73, %s74
      %p78 = pneg %p72
      %p79 = scmp.eq.s32.totalorder %s11, 1
      %p80 = por %p78, %p79
      %p81 = scmp.ne.s32.totalorder %s73, %s76
      %p82 = scmp.eq.s32.totalorder %s11, 0
      %p83 = por %p81, %p82
      %p84 = scmp.ne.s32.totalorder %s73, %s76
      %p85 = scmp.eq.s32.totalorder %s16, 1
      %p86 = por %p84, %p85
      %p87 = scmp.ne.s32.totalorder %s76, %s77
      %p88 = scmp.eq.s32.totalorder %s16, 0
      %p89 = por %p87, %p88
      %p90 = scmp.ne.s32.totalorder %s76, %s77
      %p91 = scmp.eq.s32.totalorder %s17, 1
      %p92 = por %p90, %p91
      %p94 = scmp.ne.s32.totalorder %s77, %s93
      %p95 = scmp.eq.s32.totalorder %s17, 0
      %p96 = por %p94, %p95
      %s98 = sadd.s32 %s97, 1
      %p101 = scmp.eq.s32.totalorder %s11, 1
      %p102 = scmp.ne.s32.totalorder %s97, %s99
      %p103 = scmp.eq.s32.totalorder %s11, 0
      %p104 = por %p102, %p103
      %p105 = scmp.ne.s32.totalorder %s97, %s99
      %p106 = scmp.eq.s32.totalorder %s16, 1
      %p107 = por %p105, %p106
      %p108 = scmp.ne.s32.totalorder %s99, %s100
      %p109 = scmp.eq.s32.totalorder %s16, 0
      %p110 = por %p108, %p109
      %p111 = scmp.ne.s32.totalorder %s99, %s100
      %p112 = scmp.eq.s32.totalorder %s17, 1
      %p113 = por %p111, %p112
      %p115 = scmp.ne.s32.totalorder %s100, %s114
      %p116 = scmp.eq.s32.totalorder %s17, 0
      %p117 = por %p115, %p116
      %s119 = sadd.s32 %s118, 1
      %p122 = scmp.eq.s32.totalorder %s11, 1
      %p123 = scmp.ne.s32.totalorder %s118, %s120
      %p124 = scmp.eq.s32.totalorder %s11, 0
      %p125 = por %p123, %p124
      %p126 = scmp.ne.s32.totalorder %s118, %s120
      %p127 = scmp.eq.s32.totalorder %s16, 1
      %p128 = por %p126, %p127
      %p129 = scmp.ne.s32.totalorder %s120, %s121
      %p130 = scmp.eq.s32.totalorder %s16, 0
      %p131 = por %p129, %p130
      %p132 = scmp.ne.s32.totalorder %s120, %s121
      %p133 = scmp.eq.s32.totalorder %s17, 1
      %p134 = por %p132, %p133
      %p136 = scmp.ne.s32.totalorder %s121, %s135
      %p137 = scmp.eq.s32.totalorder %s17, 0
      %p138 = por %p136, %p137
      %s139 = ssub.s32 %s11, %s18
      %p140 = scmp.eq.s32.totalorder %s139, 0
      %s142 = sadd.s32 %s141, 1
      %s143 = scalar_select %p140, %s141, %s142
      %p146 = pneg %p140
      %p147 = scmp.eq.s32.totalorder %s11, 1
      %p148 = por %p146, %p147
      %p149 = scmp.ne.s32.totalorder %s141, %s144
      %p150 = scmp.eq.s32.totalorder %s11, 0
      %p151 = por %p149, %p150
      %p152 = scmp.ne.s32.totalorder %s141, %s144
      %p153 = scmp.eq.s32.totalorder %s16, 1
      %p154 = por %p152, %p153
      %p155 = scmp.ne.s32.totalorder %s144, %s145
      %p156 = scmp.eq.s32.totalorder %s16, 0
      %p157 = por %p155, %p156
      %p158 = scmp.ne.s32.totalorder %s144, %s145
      %p159 = scmp.eq.s32.totalorder %s17, 1
      %p160 = por %p158, %p159
      %p162 = scmp.ne.s32.totalorder %s145, %s161
      %p163 = scmp.eq.s32.totalorder %s17, 0
      %p164 = por %p162, %p163
      %p165 = scmp.le.s32.totalorder 1, %s11
      %p166 = scmp.lt.s32.totalorder %s11, 3
      %p167 = pnand %p165, %p166
      %p168 = pneg %p167
      // Predicated region
      $region9: #{gkt_multi_head_attention.1} parent=5 // pred_check
        _
      $region10: #{gkt_multi_head_attention.1} parent=5 // pred_check_branch
        %170 = sbr.rel (%p167) target = $region12
      $region11: #{gkt_multi_head_attention.1} parent=5 // pred_region
        %s171 = ssub.s32 %s11, 1
        // Predicated region
        $region13: #{gkt_multi_head_attention.1} parent=11 // pred_check
          %p172 = pneg %p110
        $region14: #{gkt_multi_head_attention.1} parent=11 // pred_check_branch
          %174 = sbr.rel (%p172) target = $region16
        $region15: #{gkt_multi_head_attention.1} parent=11 // pred_region
          _
        $region16: #{gkt_multi_head_attention.1} parent=11 // pred_fallthru
          _
        // Predicated region
        $region17: #{gkt_multi_head_attention.1} parent=11 // pred_check
          %p175 = pneg %p131
        $region18: #{gkt_multi_head_attention.1} parent=11 // pred_check_branch
          %177 = sbr.rel (%p175) target = $region20
        $region19: #{gkt_multi_head_attention.1} parent=11 // pred_region
          _
        $region20: #{gkt_multi_head_attention.1} parent=11 // pred_fallthru
          _
      $region12: #{gkt_multi_head_attention.1} parent=5 // pred_fallthru
        _
      %p178 = scmp.lt.s32.totalorder %s11, 2
      // Predicated region
      $region21: #{gkt_multi_head_attention.1} parent=5 // pred_check
        %p179 = pneg %p178
      $region22: #{gkt_multi_head_attention.1} parent=5 // pred_check_branch
        %181 = sbr.rel (%p179) target = $region24
      $region23: #{gkt_multi_head_attention.1} parent=5 // pred_region
        // Predicated region
        $region25: #{gkt_multi_head_attention.1} parent=23 // pred_check
          %p182 = pneg %p31
        $region26: #{gkt_multi_head_attention.1} parent=23 // pred_check_branch
          %184 = sbr.rel (%p182) target = $region28
        $region27: #{gkt_multi_head_attention.1} parent=23 // pred_region
          %s185 = sand.u32 %s21, 1
          %s186 = sand.u32 %s21, 1
          %s187 = smul.addr %s186, 256
          %s188 = scalar_lea.vmem [#allocation2], %s187
          %s189 = smul.addr %s11, 8
          %s190 = scalar_lea.vmem %s0, %s189
          // Predicated region
          $region29: #{gkt_multi_head_attention.1} parent=27 // pred_check
            _
          $region30: #{gkt_multi_head_attention.1} parent=27 // pred_check_branch
            %192 = sbr.rel (0) target = $region32
          $region31: #{gkt_multi_head_attention.1} parent=27 // pred_region
            // Predicated region
            $region33: #{gkt_multi_head_attention.1} parent=31 // pred_check
              _
            $region34: #{gkt_multi_head_attention.1} parent=31 // pred_check_branch
              %194 = sbr.rel (0) target = $region36
            $region35: #{gkt_multi_head_attention.1} parent=31 // pred_region
              // Predicated region
              $region48: #{gkt_multi_head_attention.1} parent=35 // pred_check
                _
              $region49: #{gkt_multi_head_attention.1} parent=35 // pred_check_branch
                %272 = sbr.rel (0) target = $region51
              $region50: #{gkt_multi_head_attention.1} parent=35 // pred_region
                loop: start=0, step=1, limit=1
                $region52: #{gkt_multi_head_attention.1} parent=50 // loop_pre_header
                  _
                $region53: #{gkt_multi_head_attention.1} parent=50 // loop_header
                  %s274 = sphi 0, %s278
                  %p275 = scmp.ge.s32.totalorder %s274, 1
                  %s279 = sphi %s190, %s190
                  %s280 = sphi %s188, %s188
                $region54: #{gkt_multi_head_attention.1} parent=50 // loop_header_branch
                  %277 = sbr.rel (%p275) target = $region58
                $region55: #{gkt_multi_head_attention.1} parent=50 // loop_body
                  %v281 = vld [vmem:[%s279] sm:$0xff]
                  %282 = vst [vmem:[%s280] sm:$0xff] %v281
                  %v283 = vld [vmem:[%s279 + $0x10] sm:$0xff]
                  %284 = vst [vmem:[%s280 + $0x8] sm:$0xff] %v283
                  %v285 = vld [vmem:[%s279 + $0x20] sm:$0xff]
                  %286 = vst [vmem:[%s280 + $0x10] sm:$0xff] %v285
                  %v287 = vld [vmem:[%s279 + $0x30] sm:$0xff]
                  %288 = vst [vmem:[%s280 + $0x18] sm:$0xff] %v287
                  %v289 = vld [vmem:[%s279 + $0x40] sm:$0xff]
                  %290 = vst [vmem:[%s280 + $0x20] sm:$0xff] %v289
                  %v291 = vld [vmem:[%s279 + $0x50] sm:$0xff]
                  %292 = vst [vmem:[%s280 + $0x28] sm:$0xff] %v291
                  %v293 = vld [vmem:[%s279 + $0x60] sm:$0xff]
                  %294 = vst [vmem:[%s280 + $0x30] sm:$0xff] %v293
                  %v295 = vld [vmem:[%s279 + $0x70] sm:$0xff]
                  %296 = vst [vmem:[%s280 + $0x38] sm:$0xff] %v295
                  %v297 = vld [vmem:[%s279 + $0x80] sm:$0xff]
                  %298 = vst [vmem:[%s280 + $0x40] sm:$0xff] %v297
                  %v299 = vld [vmem:[%s279 + $0x90] sm:$0xff]
                  %300 = vst [vmem:[%s280 + $0x48] sm:$0xff] %v299
                  %v301 = vld [vmem:[%s279 + $0xa0] sm:$0xff]
                  %302 = vst [vmem:[%s280 + $0x50] sm:$0xff] %v301
                  %v303 = vld [vmem:[%s279 + $0xb0] sm:$0xff]
                  %304 = vst [vmem:[%s280 + $0x58] sm:$0xff] %v303
                  %v305 = vld [vmem:[%s279 + $0xc0] sm:$0xff]
                  %306 = vst [vmem:[%s280 + $0x60] sm:$0xff] %v305
                  %v307 = vld [vmem:[%s279 + $0xd0] sm:$0xff]
                  %308 = vst [vmem:[%s280 + $0x68] sm:$0xff] %v307
                  %v309 = vld [vmem:[%s279 + $0xe0] sm:$0xff]
                  %310 = vst [vmem:[%s280 + $0x70] sm:$0xff] %v309
                  %v311 = vld [vmem:[%s279 + $0xf0] sm:$0xff]
                  %312 = vst [vmem:[%s280 + $0x78] sm:$0xff] %v311
                  %v313 = vld [vmem:[%s279 + $0x100] sm:$0xff]
                  %314 = vst [vmem:[%s280 + $0x80] sm:$0xff] %v313
                  %v315 = vld [vmem:[%s279 + $0x110] sm:$0xff]
                  %316 = vst [vmem:[%s280 + $0x88] sm:$0xff] %v315
                  %v317 = vld [vmem:[%s279 + $0x120] sm:$0xff]
                  %318 = vst [vmem:[%s280 + $0x90] sm:$0xff] %v317
                  %v319 = vld [vmem:[%s279 + $0x130] sm:$0xff]
                  %320 = vst [vmem:[%s280 + $0x98] sm:$0xff] %v319
                  %v321 = vld [vmem:[%s279 + $0x140] sm:$0xff]
                  %322 = vst [vmem:[%s280 + $0xa0] sm:$0xff] %v321
                  %v323 = vld [vmem:[%s279 + $0x150] sm:$0xff]
                  %324 = vst [vmem:[%s280 + $0xa8] sm:$0xff] %v323
                  %v325 = vld [vmem:[%s279 + $0x160] sm:$0xff]
                  %326 = vst [vmem:[%s280 + $0xb0] sm:$0xff] %v325
                  %v327 = vld [vmem:[%s279 + $0x170] sm:$0xff]
                  %328 = vst [vmem:[%s280 + $0xb8] sm:$0xff] %v327
                  %v329 = vld [vmem:[%s279 + $0x180] sm:$0xff]
                  %330 = vst [vmem:[%s280 + $0xc0] sm:$0xff] %v329
                  %v331 = vld [vmem:[%s279 + $0x190] sm:$0xff]
                  %332 = vst [vmem:[%s280 + $0xc8] sm:$0xff] %v331
                  %v333 = vld [vmem:[%s279 + $0x1a0] sm:$0xff]
                  %334 = vst [vmem:[%s280 + $0xd0] sm:$0xff] %v333
                  %v335 = vld [vmem:[%s279 + $0x1b0] sm:$0xff]
                  %336 = vst [vmem:[%s280 + $0xd8] sm:$0xff] %v335
                  %v337 = vld [vmem:[%s279 + $0x1c0] sm:$0xff]
                  %338 = vst [vmem:[%s280 + $0xe0] sm:$0xff] %v337
                  %v339 = vld [vmem:[%s279 + $0x1d0] sm:$0xff]
                  %340 = vst [vmem:[%s280 + $0xe8] sm:$0xff] %v339
                  %v341 = vld [vmem:[%s279 + $0x1e0] sm:$0xff]
                  %342 = vst [vmem:[%s280 + $0xf0] sm:$0xff] %v341
                  %v343 = vld [vmem:[%s279 + $0x1f0] sm:$0xff]
                  %344 = vst [vmem:[%s280 + $0xf8] sm:$0xff] %v343
                $region56: #{gkt_multi_head_attention.1} parent=50 // loop_footer
                  %s278 = sadd.s32 1, %s274
                $region57: #{gkt_multi_head_attention.1} parent=50 // loop_footer_branch
                  %273 = sbr.rel target = $region53
                $region58: #{gkt_multi_head_attention.1} parent=50 // loop_exit
                  _
              $region51: #{gkt_multi_head_attention.1} parent=35 // pred_fallthru
                _
              // Predicated region
              $region59: #{gkt_multi_head_attention.1} parent=35 // pred_check
                _
              $region60: #{gkt_multi_head_attention.1} parent=35 // pred_check_branch
                %346 = sbr.rel target = $region62
              $region61: #{gkt_multi_head_attention.1} parent=35 // pred_region
                _
              $region62: #{gkt_multi_head_attention.1} parent=35 // pred_fallthru
                _
            $region36: #{gkt_multi_head_attention.1} parent=31 // pred_fallthru
              _
            // Predicated region
            $region37: #{gkt_multi_head_attention.1} parent=31 // pred_check
              _
            $region38: #{gkt_multi_head_attention.1} parent=31 // pred_check_branch
              %196 = sbr.rel target = $region40
            $region39: #{gkt_multi_head_attention.1} parent=31 // pred_region
              %s198 = ssub.s32 256, 1
              loop: start=0, step=1, limit=1
              $region41: #{gkt_multi_head_attention.1} parent=39 // loop_pre_header
                _
              $region42: #{gkt_multi_head_attention.1} parent=39 // loop_header
                %s200 = sphi 0, %s204
                %p201 = scmp.ge.s32.totalorder %s200, 1
                %s205 = sphi %s190, %s190
                %s206 = sphi %s188, %s188
              $region43: #{gkt_multi_head_attention.1} parent=39 // loop_header_branch
                %203 = sbr.rel (%p201) target = $region47
              $region44: #{gkt_multi_head_attention.1} parent=39 // loop_body
                %v207 = vld [vmem:[%s205] sm:%s198]
                %208 = vst [vmem:[%s206] sm:%s198] %v207
                %v209 = vld [vmem:[%s205 + $0x10] sm:%s198]
                %210 = vst [vmem:[%s206 + $0x8] sm:%s198] %v209
                %v211 = vld [vmem:[%s205 + $0x20] sm:%s198]
                %212 = vst [vmem:[%s206 + $0x10] sm:%s198] %v211
                %v213 = vld [vmem:[%s205 + $0x30] sm:%s198]
                %214 = vst [vmem:[%s206 + $0x18] sm:%s198] %v213
                %v215 = vld [vmem:[%s205 + $0x40] sm:%s198]
                %216 = vst [vmem:[%s206 + $0x20] sm:%s198] %v215
                %v217 = vld [vmem:[%s205 + $0x50] sm:%s198]
                %218 = vst [vmem:[%s206 + $0x28] sm:%s198] %v217
                %v219 = vld [vmem:[%s205 + $0x60] sm:%s198]
                %220 = vst [vmem:[%s206 + $0x30] sm:%s198] %v219
                %v221 = vld [vmem:[%s205 + $0x70] sm:%s198]
                %222 = vst [vmem:[%s206 + $0x38] sm:%s198] %v221
                %v223 = vld [vmem:[%s205 + $0x80] sm:%s198]
                %224 = vst [vmem:[%s206 + $0x40] sm:%s198] %v223
                %v225 = vld [vmem:[%s205 + $0x90] sm:%s198]
                %226 = vst [vmem:[%s206 + $0x48] sm:%s198] %v225
                %v227 = vld [vmem:[%s205 + $0xa0] sm:%s198]
                %228 = vst [vmem:[%s206 + $0x50] sm:%s198] %v227
                %v229 = vld [vmem:[%s205 + $0xb0] sm:%s198]
                %230 = vst [vmem:[%s206 + $0x58] sm:%s198] %v229
                %v231 = vld [vmem:[%s205 + $0xc0] sm:%s198]
                %232 = vst [vmem:[%s206 + $0x60] sm:%s198] %v231
                %v233 = vld [vmem:[%s205 + $0xd0] sm:%s198]
                %234 = vst [vmem:[%s206 + $0x68] sm:%s198] %v233
                %v235 = vld [vmem:[%s205 + $0xe0] sm:%s198]
                %236 = vst [vmem:[%s206 + $0x70] sm:%s198] %v235
                %v237 = vld [vmem:[%s205 + $0xf0] sm:%s198]
                %238 = vst [vmem:[%s206 + $0x78] sm:%s198] %v237
                %v239 = vld [vmem:[%s205 + $0x100] sm:%s198]
                %240 = vst [vmem:[%s206 + $0x80] sm:%s198] %v239
                %v241 = vld [vmem:[%s205 + $0x110] sm:%s198]
                %242 = vst [vmem:[%s206 + $0x88] sm:%s198] %v241
                %v243 = vld [vmem:[%s205 + $0x120] sm:%s198]
                %244 = vst [vmem:[%s206 + $0x90] sm:%s198] %v243
                %v245 = vld [vmem:[%s205 + $0x130] sm:%s198]
                %246 = vst [vmem:[%s206 + $0x98] sm:%s198] %v245
                %v247 = vld [vmem:[%s205 + $0x140] sm:%s198]
                %248 = vst [vmem:[%s206 + $0xa0] sm:%s198] %v247
                %v249 = vld [vmem:[%s205 + $0x150] sm:%s198]
                %250 = vst [vmem:[%s206 + $0xa8] sm:%s198] %v249
                %v251 = vld [vmem:[%s205 + $0x160] sm:%s198]
                %252 = vst [vmem:[%s206 + $0xb0] sm:%s198] %v251
                %v253 = vld [vmem:[%s205 + $0x170] sm:%s198]
                %254 = vst [vmem:[%s206 + $0xb8] sm:%s198] %v253
                %v255 = vld [vmem:[%s205 + $0x180] sm:%s198]
                %256 = vst [vmem:[%s206 + $0xc0] sm:%s198] %v255
                %v257 = vld [vmem:[%s205 + $0x190] sm:%s198]
                %258 = vst [vmem:[%s206 + $0xc8] sm:%s198] %v257
                %v259 = vld [vmem:[%s205 + $0x1a0] sm:%s198]
                %260 = vst [vmem:[%s206 + $0xd0] sm:%s198] %v259
                %v261 = vld [vmem:[%s205 + $0x1b0] sm:%s198]
                %262 = vst [vmem:[%s206 + $0xd8] sm:%s198] %v261
                %v263 = vld [vmem:[%s205 + $0x1c0] sm:%s198]
                %264 = vst [vmem:[%s206 + $0xe0] sm:%s198] %v263
                %v265 = vld [vmem:[%s205 + $0x1d0] sm:%s198]
                %266 = vst [vmem:[%s206 + $0xe8] sm:%s198] %v265
                %v267 = vld [vmem:[%s205 + $0x1e0] sm:%s198]
                %268 = vst [vmem:[%s206 + $0xf0] sm:%s198] %v267
                %v269 = vld [vmem:[%s205 + $0x1f0] sm:%s198]
                %270 = vst [vmem:[%s206 + $0xf8] sm:%s198] %v269
              $region45: #{gkt_multi_head_attention.1} parent=39 // loop_footer
                %s204 = sadd.s32 1, %s200
              $region46: #{gkt_multi_head_attention.1} parent=39 // loop_footer_branch
                %199 = sbr.rel target = $region42
              $region47: #{gkt_multi_head_attention.1} parent=39 // loop_exit
                _
            $region40: #{gkt_multi_head_attention.1} parent=31 // pred_fallthru
              _
          $region32: #{gkt_multi_head_attention.1} parent=27 // pred_fallthru
            _
          %347 = vnop
        $region28: #{gkt_multi_head_attention.1} parent=23 // pred_fallthru
          _
        // Predicated region
        $region63: #{gkt_multi_head_attention.1} parent=23 // pred_check
          %p348 = pneg %p57
        $region64: #{gkt_multi_head_attention.1} parent=23 // pred_check_branch
          %350 = sbr.rel (%p348) target = $region66
        $region65: #{gkt_multi_head_attention.1} parent=23 // pred_region
          %s351 = sand.u32 %s47, 1
          %s352 = sand.u32 %s47, 1
          %s353 = smul.addr %s352, 256
          %s354 = scalar_lea.vmem [#allocation3], %s353
          %s355 = smul.addr %s11, 8
          %s356 = scalar_lea.vmem %s1, %s355
          // Predicated region
          $region67: #{gkt_multi_head_attention.1} parent=65 // pred_check
            _
          $region68: #{gkt_multi_head_attention.1} parent=65 // pred_check_branch
            %358 = sbr.rel (0) target = $region70
          $region69: #{gkt_multi_head_attention.1} parent=65 // pred_region
            // Predicated region
            $region71: #{gkt_multi_head_attention.1} parent=69 // pred_check
              _
            $region72: #{gkt_multi_head_attention.1} parent=69 // pred_check_branch
              %360 = sbr.rel (0) target = $region74
            $region73: #{gkt_multi_head_attention.1} parent=69 // pred_region
              // Predicated region
              $region86: #{gkt_multi_head_attention.1} parent=73 // pred_check
                _
              $region87: #{gkt_multi_head_attention.1} parent=73 // pred_check_branch
                %438 = sbr.rel (0) target = $region89
              $region88: #{gkt_multi_head_attention.1} parent=73 // pred_region
                loop: start=0, step=1, limit=1
                $region90: #{gkt_multi_head_attention.1} parent=88 // loop_pre_header
                  _
                $region91: #{gkt_multi_head_attention.1} parent=88 // loop_header
                  %s440 = sphi 0, %s444
                  %p441 = scmp.ge.s32.totalorder %s440, 1
                  %s445 = sphi %s356, %s356
                  %s446 = sphi %s354, %s354
                $region92: #{gkt_multi_head_attention.1} parent=88 // loop_header_branch
                  %443 = sbr.rel (%p441) target = $region96
                $region93: #{gkt_multi_head_attention.1} parent=88 // loop_body
                  %v447 = vld [vmem:[%s445] sm:$0xff]
                  %448 = vst [vmem:[%s446] sm:$0xff] %v447
                  %v449 = vld [vmem:[%s445 + $0x10] sm:$0xff]
                  %450 = vst [vmem:[%s446 + $0x8] sm:$0xff] %v449
                  %v451 = vld [vmem:[%s445 + $0x20] sm:$0xff]
                  %452 = vst [vmem:[%s446 + $0x10] sm:$0xff] %v451
                  %v453 = vld [vmem:[%s445 + $0x30] sm:$0xff]
                  %454 = vst [vmem:[%s446 + $0x18] sm:$0xff] %v453
                  %v455 = vld [vmem:[%s445 + $0x40] sm:$0xff]
                  %456 = vst [vmem:[%s446 + $0x20] sm:$0xff] %v455
                  %v457 = vld [vmem:[%s445 + $0x50] sm:$0xff]
                  %458 = vst [vmem:[%s446 + $0x28] sm:$0xff] %v457
                  %v459 = vld [vmem:[%s445 + $0x60] sm:$0xff]
                  %460 = vst [vmem:[%s446 + $0x30] sm:$0xff] %v459
                  %v461 = vld [vmem:[%s445 + $0x70] sm:$0xff]
                  %462 = vst [vmem:[%s446 + $0x38] sm:$0xff] %v461
                  %v463 = vld [vmem:[%s445 + $0x80] sm:$0xff]
                  %464 = vst [vmem:[%s446 + $0x40] sm:$0xff] %v463
                  %v465 = vld [vmem:[%s445 + $0x90] sm:$0xff]
                  %466 = vst [vmem:[%s446 + $0x48] sm:$0xff] %v465
                  %v467 = vld [vmem:[%s445 + $0xa0] sm:$0xff]
                  %468 = vst [vmem:[%s446 + $0x50] sm:$0xff] %v467
                  %v469 = vld [vmem:[%s445 + $0xb0] sm:$0xff]
                  %470 = vst [vmem:[%s446 + $0x58] sm:$0xff] %v469
                  %v471 = vld [vmem:[%s445 + $0xc0] sm:$0xff]
                  %472 = vst [vmem:[%s446 + $0x60] sm:$0xff] %v471
                  %v473 = vld [vmem:[%s445 + $0xd0] sm:$0xff]
                  %474 = vst [vmem:[%s446 + $0x68] sm:$0xff] %v473
                  %v475 = vld [vmem:[%s445 + $0xe0] sm:$0xff]
                  %476 = vst [vmem:[%s446 + $0x70] sm:$0xff] %v475
                  %v477 = vld [vmem:[%s445 + $0xf0] sm:$0xff]
                  %478 = vst [vmem:[%s446 + $0x78] sm:$0xff] %v477
                  %v479 = vld [vmem:[%s445 + $0x100] sm:$0xff]
                  %480 = vst [vmem:[%s446 + $0x80] sm:$0xff] %v479
                  %v481 = vld [vmem:[%s445 + $0x110] sm:$0xff]
                  %482 = vst [vmem:[%s446 + $0x88] sm:$0xff] %v481
                  %v483 = vld [vmem:[%s445 + $0x120] sm:$0xff]
                  %484 = vst [vmem:[%s446 + $0x90] sm:$0xff] %v483
                  %v485 = vld [vmem:[%s445 + $0x130] sm:$0xff]
                  %486 = vst [vmem:[%s446 + $0x98] sm:$0xff] %v485
                  %v487 = vld [vmem:[%s445 + $0x140] sm:$0xff]
                  %488 = vst [vmem:[%s446 + $0xa0] sm:$0xff] %v487
                  %v489 = vld [vmem:[%s445 + $0x150] sm:$0xff]
                  %490 = vst [vmem:[%s446 + $0xa8] sm:$0xff] %v489
                  %v491 = vld [vmem:[%s445 + $0x160] sm:$0xff]
                  %492 = vst [vmem:[%s446 + $0xb0] sm:$0xff] %v491
                  %v493 = vld [vmem:[%s445 + $0x170] sm:$0xff]
                  %494 = vst [vmem:[%s446 + $0xb8] sm:$0xff] %v493
                  %v495 = vld [vmem:[%s445 + $0x180] sm:$0xff]
                  %496 = vst [vmem:[%s446 + $0xc0] sm:$0xff] %v495
                  %v497 = vld [vmem:[%s445 + $0x190] sm:$0xff]
                  %498 = vst [vmem:[%s446 + $0xc8] sm:$0xff] %v497
                  %v499 = vld [vmem:[%s445 + $0x1a0] sm:$0xff]
                  %500 = vst [vmem:[%s446 + $0xd0] sm:$0xff] %v499
                  %v501 = vld [vmem:[%s445 + $0x1b0] sm:$0xff]
                  %502 = vst [vmem:[%s446 + $0xd8] sm:$0xff] %v501
                  %v503 = vld [vmem:[%s445 + $0x1c0] sm:$0xff]
                  %504 = vst [vmem:[%s446 + $0xe0] sm:$0xff] %v503
                  %v505 = vld [vmem:[%s445 + $0x1d0] sm:$0xff]
                  %506 = vst [vmem:[%s446 + $0xe8] sm:$0xff] %v505
                  %v507 = vld [vmem:[%s445 + $0x1e0] sm:$0xff]
                  %508 = vst [vmem:[%s446 + $0xf0] sm:$0xff] %v507
                  %v509 = vld [vmem:[%s445 + $0x1f0] sm:$0xff]
                  %510 = vst [vmem:[%s446 + $0xf8] sm:$0xff] %v509
                $region94: #{gkt_multi_head_attention.1} parent=88 // loop_footer
                  %s444 = sadd.s32 1, %s440
                $region95: #{gkt_multi_head_attention.1} parent=88 // loop_footer_branch
                  %439 = sbr.rel target = $region91
                $region96: #{gkt_multi_head_attention.1} parent=88 // loop_exit
                  _
              $region89: #{gkt_multi_head_attention.1} parent=73 // pred_fallthru
                _
              // Predicated region
              $region97: #{gkt_multi_head_attention.1} parent=73 // pred_check
                _
              $region98: #{gkt_multi_head_attention.1} parent=73 // pred_check_branch
                %512 = sbr.rel target = $region100
              $region99: #{gkt_multi_head_attention.1} parent=73 // pred_region
                _
              $region100: #{gkt_multi_head_attention.1} parent=73 // pred_fallthru
                _
            $region74: #{gkt_multi_head_attention.1} parent=69 // pred_fallthru
              _
            // Predicated region
            $region75: #{gkt_multi_head_attention.1} parent=69 // pred_check
              _
            $region76: #{gkt_multi_head_attention.1} parent=69 // pred_check_branch
              %362 = sbr.rel target = $region78
            $region77: #{gkt_multi_head_attention.1} parent=69 // pred_region
              %s364 = ssub.s32 256, 1
              loop: start=0, step=1, limit=1
              $region79: #{gkt_multi_head_attention.1} parent=77 // loop_pre_header
                _
              $region80: #{gkt_multi_head_attention.1} parent=77 // loop_header
                %s366 = sphi 0, %s370
                %p367 = scmp.ge.s32.totalorder %s366, 1
                %s371 = sphi %s356, %s356
                %s372 = sphi %s354, %s354
              $region81: #{gkt_multi_head_attention.1} parent=77 // loop_header_branch
                %369 = sbr.rel (%p367) target = $region85
              $region82: #{gkt_multi_head_attention.1} parent=77 // loop_body
                %v373 = vld [vmem:[%s371] sm:%s364]
                %374 = vst [vmem:[%s372] sm:%s364] %v373
                %v375 = vld [vmem:[%s371 + $0x10] sm:%s364]
                %376 = vst [vmem:[%s372 + $0x8] sm:%s364] %v375
                %v377 = vld [vmem:[%s371 + $0x20] sm:%s364]
                %378 = vst [vmem:[%s372 + $0x10] sm:%s364] %v377
                %v379 = vld [vmem:[%s371 + $0x30] sm:%s364]
                %380 = vst [vmem:[%s372 + $0x18] sm:%s364] %v379
                %v381 = vld [vmem:[%s371 + $0x40] sm:%s364]
                %382 = vst [vmem:[%s372 + $0x20] sm:%s364] %v381
                %v383 = vld [vmem:[%s371 + $0x50] sm:%s364]
                %384 = vst [vmem:[%s372 + $0x28] sm:%s364] %v383
                %v385 = vld [vmem:[%s371 + $0x60] sm:%s364]
                %386 = vst [vmem:[%s372 + $0x30] sm:%s364] %v385
                %v387 = vld [vmem:[%s371 + $0x70] sm:%s364]
                %388 = vst [vmem:[%s372 + $0x38] sm:%s364] %v387
                %v389 = vld [vmem:[%s371 + $0x80] sm:%s364]
                %390 = vst [vmem:[%s372 + $0x40] sm:%s364] %v389
                %v391 = vld [vmem:[%s371 + $0x90] sm:%s364]
                %392 = vst [vmem:[%s372 + $0x48] sm:%s364] %v391
                %v393 = vld [vmem:[%s371 + $0xa0] sm:%s364]
                %394 = vst [vmem:[%s372 + $0x50] sm:%s364] %v393
                %v395 = vld [vmem:[%s371 + $0xb0] sm:%s364]
                %396 = vst [vmem:[%s372 + $0x58] sm:%s364] %v395
                %v397 = vld [vmem:[%s371 + $0xc0] sm:%s364]
                %398 = vst [vmem:[%s372 + $0x60] sm:%s364] %v397
                %v399 = vld [vmem:[%s371 + $0xd0] sm:%s364]
                %400 = vst [vmem:[%s372 + $0x68] sm:%s364] %v399
                %v401 = vld [vmem:[%s371 + $0xe0] sm:%s364]
                %402 = vst [vmem:[%s372 + $0x70] sm:%s364] %v401
                %v403 = vld [vmem:[%s371 + $0xf0] sm:%s364]
                %404 = vst [vmem:[%s372 + $0x78] sm:%s364] %v403
                %v405 = vld [vmem:[%s371 + $0x100] sm:%s364]
                %406 = vst [vmem:[%s372 + $0x80] sm:%s364] %v405
                %v407 = vld [vmem:[%s371 + $0x110] sm:%s364]
                %408 = vst [vmem:[%s372 + $0x88] sm:%s364] %v407
                %v409 = vld [vmem:[%s371 + $0x120] sm:%s364]
                %410 = vst [vmem:[%s372 + $0x90] sm:%s364] %v409
                %v411 = vld [vmem:[%s371 + $0x130] sm:%s364]
                %412 = vst [vmem:[%s372 + $0x98] sm:%s364] %v411
                %v413 = vld [vmem:[%s371 + $0x140] sm:%s364]
                %414 = vst [vmem:[%s372 + $0xa0] sm:%s364] %v413
                %v415 = vld [vmem:[%s371 + $0x150] sm:%s364]
                %416 = vst [vmem:[%s372 + $0xa8] sm:%s364] %v415
                %v417 = vld [vmem:[%s371 + $0x160] sm:%s364]
                %418 = vst [vmem:[%s372 + $0xb0] sm:%s364] %v417
                %v419 = vld [vmem:[%s371 + $0x170] sm:%s364]
                %420 = vst [vmem:[%s372 + $0xb8] sm:%s364] %v419
                %v421 = vld [vmem:[%s371 + $0x180] sm:%s364]
                %422 = vst [vmem:[%s372 + $0xc0] sm:%s364] %v421
                %v423 = vld [vmem:[%s371 + $0x190] sm:%s364]
                %424 = vst [vmem:[%s372 + $0xc8] sm:%s364] %v423
                %v425 = vld [vmem:[%s371 + $0x1a0] sm:%s364]
                %426 = vst [vmem:[%s372 + $0xd0] sm:%s364] %v425
                %v427 = vld [vmem:[%s371 + $0x1b0] sm:%s364]
                %428 = vst [vmem:[%s372 + $0xd8] sm:%s364] %v427
                %v429 = vld [vmem:[%s371 + $0x1c0] sm:%s364]
                %430 = vst [vmem:[%s372 + $0xe0] sm:%s364] %v429
                %v431 = vld [vmem:[%s371 + $0x1d0] sm:%s364]
                %432 = vst [vmem:[%s372 + $0xe8] sm:%s364] %v431
                %v433 = vld [vmem:[%s371 + $0x1e0] sm:%s364]
                %434 = vst [vmem:[%s372 + $0xf0] sm:%s364] %v433
                %v435 = vld [vmem:[%s371 + $0x1f0] sm:%s364]
                %436 = vst [vmem:[%s372 + $0xf8] sm:%s364] %v435
              $region83: #{gkt_multi_head_attention.1} parent=77 // loop_footer
                %s370 = sadd.s32 1, %s366
              $region84: #{gkt_multi_head_attention.1} parent=77 // loop_footer_branch
                %365 = sbr.rel target = $region80
              $region85: #{gkt_multi_head_attention.1} parent=77 // loop_exit
                _
            $region78: #{gkt_multi_head_attention.1} parent=69 // pred_fallthru
              _
          $region70: #{gkt_multi_head_attention.1} parent=65 // pred_fallthru
            _
          %513 = vnop
        $region66: #{gkt_multi_head_attention.1} parent=23 // pred_fallthru
          _
        // Predicated region
        $region101: #{gkt_multi_head_attention.1} parent=23 // pred_check
          %p514 = pneg %p83
        $region102: #{gkt_multi_head_attention.1} parent=23 // pred_check_branch
          %516 = sbr.rel (%p514) target = $region104
        $region103: #{gkt_multi_head_attention.1} parent=23 // pred_region
          %s517 = sand.u32 %s73, 1
          %s518 = sand.u32 %s73, 1
          %s519 = smul.addr %s518, 256
          %s520 = scalar_lea.vmem [#allocation4], %s519
          %s521 = smul.addr %s11, 8
          %s522 = scalar_lea.vmem %s2, %s521
          // Predicated region
          $region105: #{gkt_multi_head_attention.1} parent=103 // pred_check
            _
          $region106: #{gkt_multi_head_attention.1} parent=103 // pred_check_branch
            %524 = sbr.rel (0) target = $region108
          $region107: #{gkt_multi_head_attention.1} parent=103 // pred_region
            // Predicated region
            $region109: #{gkt_multi_head_attention.1} parent=107 // pred_check
              _
            $region110: #{gkt_multi_head_attention.1} parent=107 // pred_check_branch
              %526 = sbr.rel (0) target = $region112
            $region111: #{gkt_multi_head_attention.1} parent=107 // pred_region
              // Predicated region
              $region124: #{gkt_multi_head_attention.1} parent=111 // pred_check
                _
              $region125: #{gkt_multi_head_attention.1} parent=111 // pred_check_branch
                %604 = sbr.rel (0) target = $region127
              $region126: #{gkt_multi_head_attention.1} parent=111 // pred_region
                loop: start=0, step=1, limit=1
                $region128: #{gkt_multi_head_attention.1} parent=126 // loop_pre_header
                  _
                $region129: #{gkt_multi_head_attention.1} parent=126 // loop_header
                  %s606 = sphi 0, %s610
                  %p607 = scmp.ge.s32.totalorder %s606, 1
                  %s611 = sphi %s522, %s522
                  %s612 = sphi %s520, %s520
                $region130: #{gkt_multi_head_attention.1} parent=126 // loop_header_branch
                  %609 = sbr.rel (%p607) target = $region134
                $region131: #{gkt_multi_head_attention.1} parent=126 // loop_body
                  %v613 = vld [vmem:[%s611] sm:$0xff]
                  %614 = vst [vmem:[%s612] sm:$0xff] %v613
                  %v615 = vld [vmem:[%s611 + $0x10] sm:$0xff]
                  %616 = vst [vmem:[%s612 + $0x8] sm:$0xff] %v615
                  %v617 = vld [vmem:[%s611 + $0x20] sm:$0xff]
                  %618 = vst [vmem:[%s612 + $0x10] sm:$0xff] %v617
                  %v619 = vld [vmem:[%s611 + $0x30] sm:$0xff]
                  %620 = vst [vmem:[%s612 + $0x18] sm:$0xff] %v619
                  %v621 = vld [vmem:[%s611 + $0x40] sm:$0xff]
                  %622 = vst [vmem:[%s612 + $0x20] sm:$0xff] %v621
                  %v623 = vld [vmem:[%s611 + $0x50] sm:$0xff]
                  %624 = vst [vmem:[%s612 + $0x28] sm:$0xff] %v623
                  %v625 = vld [vmem:[%s611 + $0x60] sm:$0xff]
                  %626 = vst [vmem:[%s612 + $0x30] sm:$0xff] %v625
                  %v627 = vld [vmem:[%s611 + $0x70] sm:$0xff]
                  %628 = vst [vmem:[%s612 + $0x38] sm:$0xff] %v627
                  %v629 = vld [vmem:[%s611 + $0x80] sm:$0xff]
                  %630 = vst [vmem:[%s612 + $0x40] sm:$0xff] %v629
                  %v631 = vld [vmem:[%s611 + $0x90] sm:$0xff]
                  %632 = vst [vmem:[%s612 + $0x48] sm:$0xff] %v631
                  %v633 = vld [vmem:[%s611 + $0xa0] sm:$0xff]
                  %634 = vst [vmem:[%s612 + $0x50] sm:$0xff] %v633
                  %v635 = vld [vmem:[%s611 + $0xb0] sm:$0xff]
                  %636 = vst [vmem:[%s612 + $0x58] sm:$0xff] %v635
                  %v637 = vld [vmem:[%s611 + $0xc0] sm:$0xff]
                  %638 = vst [vmem:[%s612 + $0x60] sm:$0xff] %v637
                  %v639 = vld [vmem:[%s611 + $0xd0] sm:$0xff]
                  %640 = vst [vmem:[%s612 + $0x68] sm:$0xff] %v639
                  %v641 = vld [vmem:[%s611 + $0xe0] sm:$0xff]
                  %642 = vst [vmem:[%s612 + $0x70] sm:$0xff] %v641
                  %v643 = vld [vmem:[%s611 + $0xf0] sm:$0xff]
                  %644 = vst [vmem:[%s612 + $0x78] sm:$0xff] %v643
                  %v645 = vld [vmem:[%s611 + $0x100] sm:$0xff]
                  %646 = vst [vmem:[%s612 + $0x80] sm:$0xff] %v645
                  %v647 = vld [vmem:[%s611 + $0x110] sm:$0xff]
                  %648 = vst [vmem:[%s612 + $0x88] sm:$0xff] %v647
                  %v649 = vld [vmem:[%s611 + $0x120] sm:$0xff]
                  %650 = vst [vmem:[%s612 + $0x90] sm:$0xff] %v649
                  %v651 = vld [vmem:[%s611 + $0x130] sm:$0xff]
                  %652 = vst [vmem:[%s612 + $0x98] sm:$0xff] %v651
                  %v653 = vld [vmem:[%s611 + $0x140] sm:$0xff]
                  %654 = vst [vmem:[%s612 + $0xa0] sm:$0xff] %v653
                  %v655 = vld [vmem:[%s611 + $0x150] sm:$0xff]
                  %656 = vst [vmem:[%s612 + $0xa8] sm:$0xff] %v655
                  %v657 = vld [vmem:[%s611 + $0x160] sm:$0xff]
                  %658 = vst [vmem:[%s612 + $0xb0] sm:$0xff] %v657
                  %v659 = vld [vmem:[%s611 + $0x170] sm:$0xff]
                  %660 = vst [vmem:[%s612 + $0xb8] sm:$0xff] %v659
                  %v661 = vld [vmem:[%s611 + $0x180] sm:$0xff]
                  %662 = vst [vmem:[%s612 + $0xc0] sm:$0xff] %v661
                  %v663 = vld [vmem:[%s611 + $0x190] sm:$0xff]
                  %664 = vst [vmem:[%s612 + $0xc8] sm:$0xff] %v663
                  %v665 = vld [vmem:[%s611 + $0x1a0] sm:$0xff]
                  %666 = vst [vmem:[%s612 + $0xd0] sm:$0xff] %v665
                  %v667 = vld [vmem:[%s611 + $0x1b0] sm:$0xff]
                  %668 = vst [vmem:[%s612 + $0xd8] sm:$0xff] %v667
                  %v669 = vld [vmem:[%s611 + $0x1c0] sm:$0xff]
                  %670 = vst [vmem:[%s612 + $0xe0] sm:$0xff] %v669
                  %v671 = vld [vmem:[%s611 + $0x1d0] sm:$0xff]
                  %672 = vst [vmem:[%s612 + $0xe8] sm:$0xff] %v671
                  %v673 = vld [vmem:[%s611 + $0x1e0] sm:$0xff]
                  %674 = vst [vmem:[%s612 + $0xf0] sm:$0xff] %v673
                  %v675 = vld [vmem:[%s611 + $0x1f0] sm:$0xff]
                  %676 = vst [vmem:[%s612 + $0xf8] sm:$0xff] %v675
                $region132: #{gkt_multi_head_attention.1} parent=126 // loop_footer
                  %s610 = sadd.s32 1, %s606
                $region133: #{gkt_multi_head_attention.1} parent=126 // loop_footer_branch
                  %605 = sbr.rel target = $region129
                $region134: #{gkt_multi_head_attention.1} parent=126 // loop_exit
                  _
              $region127: #{gkt_multi_head_attention.1} parent=111 // pred_fallthru
                _
              // Predicated region
              $region135: #{gkt_multi_head_attention.1} parent=111 // pred_check
                _
              $region136: #{gkt_multi_head_attention.1} parent=111 // pred_check_branch
                %678 = sbr.rel target = $region138
              $region137: #{gkt_multi_head_attention.1} parent=111 // pred_region
                _
              $region138: #{gkt_multi_head_attention.1} parent=111 // pred_fallthru
                _
            $region112: #{gkt_multi_head_attention.1} parent=107 // pred_fallthru
              _
            // Predicated region
            $region113: #{gkt_multi_head_attention.1} parent=107 // pred_check
              _
            $region114: #{gkt_multi_head_attention.1} parent=107 // pred_check_branch
              %528 = sbr.rel target = $region116
            $region115: #{gkt_multi_head_attention.1} parent=107 // pred_region
              %s530 = ssub.s32 256, 1
              loop: start=0, step=1, limit=1
              $region117: #{gkt_multi_head_attention.1} parent=115 // loop_pre_header
                _
              $region118: #{gkt_multi_head_attention.1} parent=115 // loop_header
                %s532 = sphi 0, %s536
                %p533 = scmp.ge.s32.totalorder %s532, 1
                %s537 = sphi %s522, %s522
                %s538 = sphi %s520, %s520
              $region119: #{gkt_multi_head_attention.1} parent=115 // loop_header_branch
                %535 = sbr.rel (%p533) target = $region123
              $region120: #{gkt_multi_head_attention.1} parent=115 // loop_body
                %v539 = vld [vmem:[%s537] sm:%s530]
                %540 = vst [vmem:[%s538] sm:%s530] %v539
                %v541 = vld [vmem:[%s537 + $0x10] sm:%s530]
                %542 = vst [vmem:[%s538 + $0x8] sm:%s530] %v541
                %v543 = vld [vmem:[%s537 + $0x20] sm:%s530]
                %544 = vst [vmem:[%s538 + $0x10] sm:%s530] %v543
                %v545 = vld [vmem:[%s537 + $0x30] sm:%s530]
                %546 = vst [vmem:[%s538 + $0x18] sm:%s530] %v545
                %v547 = vld [vmem:[%s537 + $0x40] sm:%s530]
                %548 = vst [vmem:[%s538 + $0x20] sm:%s530] %v547
                %v549 = vld [vmem:[%s537 + $0x50] sm:%s530]
                %550 = vst [vmem:[%s538 + $0x28] sm:%s530] %v549
                %v551 = vld [vmem:[%s537 + $0x60] sm:%s530]
                %552 = vst [vmem:[%s538 + $0x30] sm:%s530] %v551
                %v553 = vld [vmem:[%s537 + $0x70] sm:%s530]
                %554 = vst [vmem:[%s538 + $0x38] sm:%s530] %v553
                %v555 = vld [vmem:[%s537 + $0x80] sm:%s530]
                %556 = vst [vmem:[%s538 + $0x40] sm:%s530] %v555
                %v557 = vld [vmem:[%s537 + $0x90] sm:%s530]
                %558 = vst [vmem:[%s538 + $0x48] sm:%s530] %v557
                %v559 = vld [vmem:[%s537 + $0xa0] sm:%s530]
                %560 = vst [vmem:[%s538 + $0x50] sm:%s530] %v559
                %v561 = vld [vmem:[%s537 + $0xb0] sm:%s530]
                %562 = vst [vmem:[%s538 + $0x58] sm:%s530] %v561
                %v563 = vld [vmem:[%s537 + $0xc0] sm:%s530]
                %564 = vst [vmem:[%s538 + $0x60] sm:%s530] %v563
                %v565 = vld [vmem:[%s537 + $0xd0] sm:%s530]
                %566 = vst [vmem:[%s538 + $0x68] sm:%s530] %v565
                %v567 = vld [vmem:[%s537 + $0xe0] sm:%s530]
                %568 = vst [vmem:[%s538 + $0x70] sm:%s530] %v567
                %v569 = vld [vmem:[%s537 + $0xf0] sm:%s530]
                %570 = vst [vmem:[%s538 + $0x78] sm:%s530] %v569
                %v571 = vld [vmem:[%s537 + $0x100] sm:%s530]
                %572 = vst [vmem:[%s538 + $0x80] sm:%s530] %v571
                %v573 = vld [vmem:[%s537 + $0x110] sm:%s530]
                %574 = vst [vmem:[%s538 + $0x88] sm:%s530] %v573
                %v575 = vld [vmem:[%s537 + $0x120] sm:%s530]
                %576 = vst [vmem:[%s538 + $0x90] sm:%s530] %v575
                %v577 = vld [vmem:[%s537 + $0x130] sm:%s530]
                %578 = vst [vmem:[%s538 + $0x98] sm:%s530] %v577
                %v579 = vld [vmem:[%s537 + $0x140] sm:%s530]
                %580 = vst [vmem:[%s538 + $0xa0] sm:%s530] %v579
                %v581 = vld [vmem:[%s537 + $0x150] sm:%s530]
                %582 = vst [vmem:[%s538 + $0xa8] sm:%s530] %v581
                %v583 = vld [vmem:[%s537 + $0x160] sm:%s530]
                %584 = vst [vmem:[%s538 + $0xb0] sm:%s530] %v583
                %v585 = vld [vmem:[%s537 + $0x170] sm:%s530]
                %586 = vst [vmem:[%s538 + $0xb8] sm:%s530] %v585
                %v587 = vld [vmem:[%s537 + $0x180] sm:%s530]
                %588 = vst [vmem:[%s538 + $0xc0] sm:%s530] %v587
                %v589 = vld [vmem:[%s537 + $0x190] sm:%s530]
                %590 = vst [vmem:[%s538 + $0xc8] sm:%s530] %v589
                %v591 = vld [vmem:[%s537 + $0x1a0] sm:%s530]
                %592 = vst [vmem:[%s538 + $0xd0] sm:%s530] %v591
                %v593 = vld [vmem:[%s537 + $0x1b0] sm:%s530]
                %594 = vst [vmem:[%s538 + $0xd8] sm:%s530] %v593
                %v595 = vld [vmem:[%s537 + $0x1c0] sm:%s530]
                %596 = vst [vmem:[%s538 + $0xe0] sm:%s530] %v595
                %v597 = vld [vmem:[%s537 + $0x1d0] sm:%s530]
                %598 = vst [vmem:[%s538 + $0xe8] sm:%s530] %v597
                %v599 = vld [vmem:[%s537 + $0x1e0] sm:%s530]
                %600 = vst [vmem:[%s538 + $0xf0] sm:%s530] %v599
                %v601 = vld [vmem:[%s537 + $0x1f0] sm:%s530]
                %602 = vst [vmem:[%s538 + $0xf8] sm:%s530] %v601
              $region121: #{gkt_multi_head_attention.1} parent=115 // loop_footer
                %s536 = sadd.s32 1, %s532
              $region122: #{gkt_multi_head_attention.1} parent=115 // loop_footer_branch
                %531 = sbr.rel target = $region118
              $region123: #{gkt_multi_head_attention.1} parent=115 // loop_exit
                _
            $region116: #{gkt_multi_head_attention.1} parent=107 // pred_fallthru
              _
          $region108: #{gkt_multi_head_attention.1} parent=103 // pred_fallthru
            _
          %679 = vnop
        $region104: #{gkt_multi_head_attention.1} parent=23 // pred_fallthru
          _
      $region24: #{gkt_multi_head_attention.1} parent=5 // pred_fallthru
        _
      %p680 = scmp.le.s32.totalorder 1, %s11
      %p681 = scmp.lt.s32.totalorder %s11, 3
      %p682 = pnand %p680, %p681
      %p683 = pneg %p682
      // Predicated region
      $region139: #{gkt_multi_head_attention.1} parent=5 // pred_check
        _
      $region140: #{gkt_multi_head_attention.1} parent=5 // pred_check_branch
        %685 = sbr.rel (%p682) target = $region142
      $region141: #{gkt_multi_head_attention.1} parent=5 // pred_region
        %s686 = ssub.s32 %s11, 1
        %s687 = sand.u32 %s24, 1
        %s688 = sand.u32 %s24, 1
        %s689 = smul.addr %s688, 256
        %s690 = scalar_lea.vmem [#allocation2], %s689
        // Predicated region
        $region143: #{gkt_multi_head_attention.1} parent=141 // pred_check
          %p691 = pneg %p37
        $region144: #{gkt_multi_head_attention.1} parent=141 // pred_check_branch
          %693 = sbr.rel (%p691) target = $region146
        $region145: #{gkt_multi_head_attention.1} parent=141 // pred_region
          _
        $region146: #{gkt_multi_head_attention.1} parent=141 // pred_fallthru
          _
        %s694 = sand.u32 %s50, 1
        %s695 = sand.u32 %s50, 1
        %s696 = smul.addr %s695, 256
        %s697 = scalar_lea.vmem [#allocation3], %s696
        // Predicated region
        $region147: #{gkt_multi_head_attention.1} parent=141 // pred_check
          %p698 = pneg %p63
        $region148: #{gkt_multi_head_attention.1} parent=141 // pred_check_branch
          %700 = sbr.rel (%p698) target = $region150
        $region149: #{gkt_multi_head_attention.1} parent=141 // pred_region
          _
        $region150: #{gkt_multi_head_attention.1} parent=141 // pred_fallthru
          _
        %s701 = sand.u32 %s76, 1
        %s702 = sand.u32 %s76, 1
        %s703 = smul.addr %s702, 256
        %s704 = scalar_lea.vmem [#allocation4], %s703
        // Predicated region
        $region151: #{gkt_multi_head_attention.1} parent=141 // pred_check
          %p705 = pneg %p89
        $region152: #{gkt_multi_head_attention.1} parent=141 // pred_check_branch
          %707 = sbr.rel (%p705) target = $region154
        $region153: #{gkt_multi_head_attention.1} parent=141 // pred_region
          _
        $region154: #{gkt_multi_head_attention.1} parent=141 // pred_fallthru
          _
        %s708 = sand.u32 %s24, 1
        %s709 = sand.u32 %s24, 1
        %s710 = smul.addr %s709, 256
        %s711 = scalar_lea.vmem [#allocation2], %s710
        %p712 = pneg %p37
        %p713 = pneg %p34
        %s714 = sand.u32 %s50, 1
        %s715 = sand.u32 %s50, 1
        %s716 = smul.addr %s715, 256
        %s717 = scalar_lea.vmem [#allocation3], %s716
        %p718 = pneg %p63
        %p719 = pneg %p60
        %s720 = sand.u32 %s76, 1
        %s721 = sand.u32 %s76, 1
        %s722 = smul.addr %s721, 256
        %s723 = scalar_lea.vmem [#allocation4], %s722
        %p724 = pneg %p89
        %p725 = pneg %p86
        %p726 = pneg %p110
        %p727 = pneg %p107
        %p728 = pneg %p131
        %p729 = pneg %p128
        %p730 = pneg %p157
        %p731 = pneg %p154
        %s732 = sand.u32 %s144, 1
        %s733 = sand.u32 %s144, 1
        %s734 = smul.addr %s733, 32
        %s735 = scalar_lea.vmem [#allocation5], %s734
        %v736 = vld [vmem:[%s690] sm:$0xff]
        %v737 = vld [vmem:[%s690 + $0x8] sm:$0xff]
        %v738 = vld [vmem:[%s690 + $0x10] sm:$0xff]
        %v739 = vld [vmem:[%s690 + $0x18] sm:$0xff]
        %v740 = vld [vmem:[%s690 + $0x20] sm:$0xff]
        %v741 = vld [vmem:[%s690 + $0x28] sm:$0xff]
        %v742 = vld [vmem:[%s690 + $0x30] sm:$0xff]
        %v743 = vld [vmem:[%s690 + $0x38] sm:$0xff]
        %v744 = vld [vmem:[%s690 + $0x40] sm:$0xff]
        %v745 = vld [vmem:[%s690 + $0x48] sm:$0xff]
        %v746 = vld [vmem:[%s690 + $0x50] sm:$0xff]
        %v747 = vld [vmem:[%s690 + $0x58] sm:$0xff]
        %v748 = vld [vmem:[%s690 + $0x60] sm:$0xff]
        %v749 = vld [vmem:[%s690 + $0x68] sm:$0xff]
        %v750 = vld [vmem:[%s690 + $0x70] sm:$0xff]
        %v751 = vld [vmem:[%s690 + $0x78] sm:$0xff]
        %v752 = vld [vmem:[%s690 + $0x80] sm:$0xff]
        %v753 = vld [vmem:[%s690 + $0x88] sm:$0xff]
        %v754 = vld [vmem:[%s690 + $0x90] sm:$0xff]
        %v755 = vld [vmem:[%s690 + $0x98] sm:$0xff]
        %v756 = vld [vmem:[%s690 + $0xa0] sm:$0xff]
        %v757 = vld [vmem:[%s690 + $0xa8] sm:$0xff]
        %v758 = vld [vmem:[%s690 + $0xb0] sm:$0xff]
        %v759 = vld [vmem:[%s690 + $0xb8] sm:$0xff]
        %v760 = vld [vmem:[%s690 + $0xc0] sm:$0xff]
        %v761 = vld [vmem:[%s690 + $0xc8] sm:$0xff]
        %v762 = vld [vmem:[%s690 + $0xd0] sm:$0xff]
        %v763 = vld [vmem:[%s690 + $0xd8] sm:$0xff]
        %v764 = vld [vmem:[%s690 + $0xe0] sm:$0xff]
        %v765 = vld [vmem:[%s690 + $0xe8] sm:$0xff]
        %v766 = vld [vmem:[%s690 + $0xf0] sm:$0xff]
        %v767 = vld [vmem:[%s690 + $0xf8] sm:$0xff]
        %v768 = vld [vmem:[%s697] sm:$0xff]
        %v769 = vld [vmem:[%s697 + $0x8] sm:$0xff]
        %v770 = vld [vmem:[%s697 + $0x10] sm:$0xff]
        %v771 = vld [vmem:[%s697 + $0x18] sm:$0xff]
        %v772 = vld [vmem:[%s697 + $0x20] sm:$0xff]
        %v773 = vld [vmem:[%s697 + $0x28] sm:$0xff]
        %v774 = vld [vmem:[%s697 + $0x30] sm:$0xff]
        %v775 = vld [vmem:[%s697 + $0x38] sm:$0xff]
        %v776 = vld [vmem:[%s697 + $0x40] sm:$0xff]
        %v777 = vld [vmem:[%s697 + $0x48] sm:$0xff]
        %v778 = vld [vmem:[%s697 + $0x50] sm:$0xff]
        %v779 = vld [vmem:[%s697 + $0x58] sm:$0xff]
        %v780 = vld [vmem:[%s697 + $0x60] sm:$0xff]
        %v781 = vld [vmem:[%s697 + $0x68] sm:$0xff]
        %v782 = vld [vmem:[%s697 + $0x70] sm:$0xff]
        %v783 = vld [vmem:[%s697 + $0x78] sm:$0xff]
        %v784 = vld [vmem:[%s697 + $0x80] sm:$0xff]
        %v785 = vld [vmem:[%s697 + $0x88] sm:$0xff]
        %v786 = vld [vmem:[%s697 + $0x90] sm:$0xff]
        %v787 = vld [vmem:[%s697 + $0x98] sm:$0xff]
        %v788 = vld [vmem:[%s697 + $0xa0] sm:$0xff]
        %v789 = vld [vmem:[%s697 + $0xa8] sm:$0xff]
        %v790 = vld [vmem:[%s697 + $0xb0] sm:$0xff]
        %v791 = vld [vmem:[%s697 + $0xb8] sm:$0xff]
        %v792 = vld [vmem:[%s697 + $0xc0] sm:$0xff]
        %v793 = vld [vmem:[%s697 + $0xc8] sm:$0xff]
        %v794 = vld [vmem:[%s697 + $0xd0] sm:$0xff]
        %v795 = vld [vmem:[%s697 + $0xd8] sm:$0xff]
        %v796 = vld [vmem:[%s697 + $0xe0] sm:$0xff]
        %v797 = vld [vmem:[%s697 + $0xe8] sm:$0xff]
        %v798 = vld [vmem:[%s697 + $0xf0] sm:$0xff]
        %v799 = vld [vmem:[%s697 + $0xf8] sm:$0xff]
        %v800 = vld [vmem:[%s704] sm:$0xff]
        %v801 = vld [vmem:[%s704 + $0x8] sm:$0xff]
        %v802 = vld [vmem:[%s704 + $0x10] sm:$0xff]
        %v803 = vld [vmem:[%s704 + $0x18] sm:$0xff]
        %v804 = vld [vmem:[%s704 + $0x20] sm:$0xff]
        %v805 = vld [vmem:[%s704 + $0x28] sm:$0xff]
        %v806 = vld [vmem:[%s704 + $0x30] sm:$0xff]
        %v807 = vld [vmem:[%s704 + $0x38] sm:$0xff]
        %v808 = vld [vmem:[%s704 + $0x40] sm:$0xff]
        %v809 = vld [vmem:[%s704 + $0x48] sm:$0xff]
        %v810 = vld [vmem:[%s704 + $0x50] sm:$0xff]
        %v811 = vld [vmem:[%s704 + $0x58] sm:$0xff]
        %v812 = vld [vmem:[%s704 + $0x60] sm:$0xff]
        %v813 = vld [vmem:[%s704 + $0x68] sm:$0xff]
        %v814 = vld [vmem:[%s704 + $0x70] sm:$0xff]
        %v815 = vld [vmem:[%s704 + $0x78] sm:$0xff]
        %v816 = vld [vmem:[%s704 + $0x80] sm:$0xff]
        %v817 = vld [vmem:[%s704 + $0x88] sm:$0xff]
        %v818 = vld [vmem:[%s704 + $0x90] sm:$0xff]
        %v819 = vld [vmem:[%s704 + $0x98] sm:$0xff]
        %v820 = vld [vmem:[%s704 + $0xa0] sm:$0xff]
        %v821 = vld [vmem:[%s704 + $0xa8] sm:$0xff]
        %v822 = vld [vmem:[%s704 + $0xb0] sm:$0xff]
        %v823 = vld [vmem:[%s704 + $0xb8] sm:$0xff]
        %v824 = vld [vmem:[%s704 + $0xc0] sm:$0xff]
        %v825 = vld [vmem:[%s704 + $0xc8] sm:$0xff]
        %v826 = vld [vmem:[%s704 + $0xd0] sm:$0xff]
        %v827 = vld [vmem:[%s704 + $0xd8] sm:$0xff]
        %v828 = vld [vmem:[%s704 + $0xe0] sm:$0xff]
        %v829 = vld [vmem:[%s704 + $0xe8] sm:$0xff]
        %v830 = vld [vmem:[%s704 + $0xf0] sm:$0xff]
        %v831 = vld [vmem:[%s704 + $0xf8] sm:$0xff]
        %v832 = vld [vmem:[%s3] sm:$0xff]
        %v833 = vld [vmem:[%s3 + $0x8] sm:$0xff]
        %v834 = vld [vmem:[%s3 + $0x10] sm:$0xff]
        %v835 = vld [vmem:[%s3 + $0x18] sm:$0xff]
        %v836 = vld [vmem:[%s4] sm:$0xff]
        %v837 = vld [vmem:[%s4 + $0x8] sm:$0xff]
        %v838 = vld [vmem:[%s4 + $0x10] sm:$0xff]
        %v839 = vld [vmem:[%s4 + $0x18] sm:$0xff]
        %vm840 = vcmask 261120
        %v842 = vsel %vm840, %v832, 0
        %v845 = vsel %vm840, %v833, 0
        %v848 = vsel %vm840, %v834, 0
        %v851 = vsel %vm840, %v835, 0
        %853 = vmatpush.msra.mxu0 0.0
        %854 = vmatpush.msra.mxu0 0.0
        %855 = vmatpush.msra.mxu0 0.0
        %856 = vmatpush.msra.mxu0 0.0
        %857 = vmatpush.msra.mxu0 0.0
        %858 = vmatpush.msra.mxu0 0.0
        %859 = vmatpush.msra.mxu0 0.0
        %860 = vmatpush.msra.mxu0 0.0
        %861 = vmatpush.msra.mxu0 0.0
        %862 = vmatpush.msra.mxu0 0.0
        %863 = vmatpush.msra.mxu0 0.0
        %864 = vmatpush.msra.mxu0 0.0
        %865 = vmatpush.msra.mxu0 %v771
        %866 = vmatpush.msra.mxu0 %v770
        %867 = vmatpush.msra.mxu0 %v769
        %868 = vmatpush.msra.mxu0 %v768
        %869 = vmatmul.f32.gmra.mxu0 %v842
        %v870 = vpop.f32.mrf.mxu0
        %v871 = vadd.f32 0.0, %v870
        %872 = vmatmul.f32.gmra.mxu0 %v845
        %v873 = vpop.f32.mrf.mxu0
        %v874 = vadd.f32 0.0, %v873
        %875 = vmatmul.f32.gmra.mxu0 %v848
        %v876 = vpop.f32.mrf.mxu0
        %v877 = vadd.f32 0.0, %v876
        %878 = vmatmul.f32.gmra.mxu0 %v851
        %v879 = vpop.f32.mrf.mxu0
        %v880 = vadd.f32 0.0, %v879
        %881 = vdwg.mxu0
        %882 = vmatpush.msra.mxu0 0.0
        %883 = vmatpush.msra.mxu0 0.0
        %884 = vmatpush.msra.mxu0 0.0
        %885 = vmatpush.msra.mxu0 0.0
        %886 = vmatpush.msra.mxu0 0.0
        %887 = vmatpush.msra.mxu0 0.0
        %888 = vmatpush.msra.mxu0 0.0
        %889 = vmatpush.msra.mxu0 0.0
        %890 = vmatpush.msra.mxu0 0.0
        %891 = vmatpush.msra.mxu0 0.0
        %892 = vmatpush.msra.mxu0 0.0
        %893 = vmatpush.msra.mxu0 0.0
        %894 = vmatpush.msra.mxu0 %v775
        %895 = vmatpush.msra.mxu0 %v774
        %896 = vmatpush.msra.mxu0 %v773
        %897 = vmatpush.msra.mxu0 %v772
        %898 = vmatmul.f32.gmra.mxu0 %v842
        %v899 = vpop.f32.mrf.mxu0
        %v900 = vadd.f32 0.0, %v899
        %901 = vmatmul.f32.gmra.mxu0 %v845
        %v902 = vpop.f32.mrf.mxu0
        %v903 = vadd.f32 0.0, %v902
        %904 = vmatmul.f32.gmra.mxu0 %v848
        %v905 = vpop.f32.mrf.mxu0
        %v906 = vadd.f32 0.0, %v905
        %907 = vmatmul.f32.gmra.mxu0 %v851
        %v908 = vpop.f32.mrf.mxu0
        %v909 = vadd.f32 0.0, %v908
        %910 = vdwg.mxu0
        %911 = vmatpush.msra.mxu0 0.0
        %912 = vmatpush.msra.mxu0 0.0
        %913 = vmatpush.msra.mxu0 0.0
        %914 = vmatpush.msra.mxu0 0.0
        %915 = vmatpush.msra.mxu0 0.0
        %916 = vmatpush.msra.mxu0 0.0
        %917 = vmatpush.msra.mxu0 0.0
        %918 = vmatpush.msra.mxu0 0.0
        %919 = vmatpush.msra.mxu0 0.0
        %920 = vmatpush.msra.mxu0 0.0
        %921 = vmatpush.msra.mxu0 0.0
        %922 = vmatpush.msra.mxu0 0.0
        %923 = vmatpush.msra.mxu0 %v779
        %924 = vmatpush.msra.mxu0 %v778
        %925 = vmatpush.msra.mxu0 %v777
        %926 = vmatpush.msra.mxu0 %v776
        %927 = vmatmul.f32.gmra.mxu0 %v842
        %v928 = vpop.f32.mrf.mxu0
        %v929 = vadd.f32 0.0, %v928
        %930 = vmatmul.f32.gmra.mxu0 %v845
        %v931 = vpop.f32.mrf.mxu0
        %v932 = vadd.f32 0.0, %v931
        %933 = vmatmul.f32.gmra.mxu0 %v848
        %v934 = vpop.f32.mrf.mxu0
        %v935 = vadd.f32 0.0, %v934
        %936 = vmatmul.f32.gmra.mxu0 %v851
        %v937 = vpop.f32.mrf.mxu0
        %v938 = vadd.f32 0.0, %v937
        %939 = vdwg.mxu0
        %940 = vmatpush.msra.mxu0 0.0
        %941 = vmatpush.msra.mxu0 0.0
        %942 = vmatpush.msra.mxu0 0.0
        %943 = vmatpush.msra.mxu0 0.0
        %944 = vmatpush.msra.mxu0 0.0
        %945 = vmatpush.msra.mxu0 0.0
        %946 = vmatpush.msra.mxu0 0.0
        %947 = vmatpush.msra.mxu0 0.0
        %948 = vmatpush.msra.mxu0 0.0
        %949 = vmatpush.msra.mxu0 0.0
        %950 = vmatpush.msra.mxu0 0.0
        %951 = vmatpush.msra.mxu0 0.0
        %952 = vmatpush.msra.mxu0 %v783
        %953 = vmatpush.msra.mxu0 %v782
        %954 = vmatpush.msra.mxu0 %v781
        %955 = vmatpush.msra.mxu0 %v780
        %956 = vmatmul.f32.gmra.mxu0 %v842
        %v957 = vpop.f32.mrf.mxu0
        %v958 = vadd.f32 0.0, %v957
        %959 = vmatmul.f32.gmra.mxu0 %v845
        %v960 = vpop.f32.mrf.mxu0
        %v961 = vadd.f32 0.0, %v960
        %962 = vmatmul.f32.gmra.mxu0 %v848
        %v963 = vpop.f32.mrf.mxu0
        %v964 = vadd.f32 0.0, %v963
        %965 = vmatmul.f32.gmra.mxu0 %v851
        %v966 = vpop.f32.mrf.mxu0
        %v967 = vadd.f32 0.0, %v966
        %968 = vdwg.mxu0
        %969 = vmatpush.msra.mxu0 0.0
        %970 = vmatpush.msra.mxu0 0.0
        %971 = vmatpush.msra.mxu0 0.0
        %972 = vmatpush.msra.mxu0 0.0
        %973 = vmatpush.msra.mxu0 0.0
        %974 = vmatpush.msra.mxu0 0.0
        %975 = vmatpush.msra.mxu0 0.0
        %976 = vmatpush.msra.mxu0 0.0
        %977 = vmatpush.msra.mxu0 0.0
        %978 = vmatpush.msra.mxu0 0.0
        %979 = vmatpush.msra.mxu0 0.0
        %980 = vmatpush.msra.mxu0 0.0
        %981 = vmatpush.msra.mxu0 %v787
        %982 = vmatpush.msra.mxu0 %v786
        %983 = vmatpush.msra.mxu0 %v785
        %984 = vmatpush.msra.mxu0 %v784
        %985 = vmatmul.f32.gmra.mxu0 %v842
        %v986 = vpop.f32.mrf.mxu0
        %v987 = vadd.f32 0.0, %v986
        %988 = vmatmul.f32.gmra.mxu0 %v845
        %v989 = vpop.f32.mrf.mxu0
        %v990 = vadd.f32 0.0, %v989
        %991 = vmatmul.f32.gmra.mxu0 %v848
        %v992 = vpop.f32.mrf.mxu0
        %v993 = vadd.f32 0.0, %v992
        %994 = vmatmul.f32.gmra.mxu0 %v851
        %v995 = vpop.f32.mrf.mxu0
        %v996 = vadd.f32 0.0, %v995
        %997 = vdwg.mxu0
        %998 = vmatpush.msra.mxu0 0.0
        %999 = vmatpush.msra.mxu0 0.0
        %1000 = vmatpush.msra.mxu0 0.0
        %1001 = vmatpush.msra.mxu0 0.0
        %1002 = vmatpush.msra.mxu0 0.0
        %1003 = vmatpush.msra.mxu0 0.0
        %1004 = vmatpush.msra.mxu0 0.0
        %1005 = vmatpush.msra.mxu0 0.0
        %1006 = vmatpush.msra.mxu0 0.0
        %1007 = vmatpush.msra.mxu0 0.0
        %1008 = vmatpush.msra.mxu0 0.0
        %1009 = vmatpush.msra.mxu0 0.0
        %1010 = vmatpush.msra.mxu0 %v791
        %1011 = vmatpush.msra.mxu0 %v790
        %1012 = vmatpush.msra.mxu0 %v789
        %1013 = vmatpush.msra.mxu0 %v788
        %1014 = vmatmul.f32.gmra.mxu0 %v842
        %v1015 = vpop.f32.mrf.mxu0
        %v1016 = vadd.f32 0.0, %v1015
        %1017 = vmatmul.f32.gmra.mxu0 %v845
        %v1018 = vpop.f32.mrf.mxu0
        %v1019 = vadd.f32 0.0, %v1018
        %1020 = vmatmul.f32.gmra.mxu0 %v848
        %v1021 = vpop.f32.mrf.mxu0
        %v1022 = vadd.f32 0.0, %v1021
        %1023 = vmatmul.f32.gmra.mxu0 %v851
        %v1024 = vpop.f32.mrf.mxu0
        %v1025 = vadd.f32 0.0, %v1024
        %1026 = vdwg.mxu0
        %1027 = vmatpush.msra.mxu0 0.0
        %1028 = vmatpush.msra.mxu0 0.0
        %1029 = vmatpush.msra.mxu0 0.0
        %1030 = vmatpush.msra.mxu0 0.0
        %1031 = vmatpush.msra.mxu0 0.0
        %1032 = vmatpush.msra.mxu0 0.0
        %1033 = vmatpush.msra.mxu0 0.0
        %1034 = vmatpush.msra.mxu0 0.0
        %1035 = vmatpush.msra.mxu0 0.0
        %1036 = vmatpush.msra.mxu0 0.0
        %1037 = vmatpush.msra.mxu0 0.0
        %1038 = vmatpush.msra.mxu0 0.0
        %1039 = vmatpush.msra.mxu0 %v795
        %1040 = vmatpush.msra.mxu0 %v794
        %1041 = vmatpush.msra.mxu0 %v793
        %1042 = vmatpush.msra.mxu0 %v792
        %1043 = vmatmul.f32.gmra.mxu0 %v842
        %v1044 = vpop.f32.mrf.mxu0
        %v1045 = vadd.f32 0.0, %v1044
        %1046 = vmatmul.f32.gmra.mxu0 %v845
        %v1047 = vpop.f32.mrf.mxu0
        %v1048 = vadd.f32 0.0, %v1047
        %1049 = vmatmul.f32.gmra.mxu0 %v848
        %v1050 = vpop.f32.mrf.mxu0
        %v1051 = vadd.f32 0.0, %v1050
        %1052 = vmatmul.f32.gmra.mxu0 %v851
        %v1053 = vpop.f32.mrf.mxu0
        %v1054 = vadd.f32 0.0, %v1053
        %1055 = vdwg.mxu0
        %1056 = vmatpush.msra.mxu0 0.0
        %1057 = vmatpush.msra.mxu0 0.0
        %1058 = vmatpush.msra.mxu0 0.0
        %1059 = vmatpush.msra.mxu0 0.0
        %1060 = vmatpush.msra.mxu0 0.0
        %1061 = vmatpush.msra.mxu0 0.0
        %1062 = vmatpush.msra.mxu0 0.0
        %1063 = vmatpush.msra.mxu0 0.0
        %1064 = vmatpush.msra.mxu0 0.0
        %1065 = vmatpush.msra.mxu0 0.0
        %1066 = vmatpush.msra.mxu0 0.0
        %1067 = vmatpush.msra.mxu0 0.0
        %1068 = vmatpush.msra.mxu0 %v799
        %1069 = vmatpush.msra.mxu0 %v798
        %1070 = vmatpush.msra.mxu0 %v797
        %1071 = vmatpush.msra.mxu0 %v796
        %1072 = vmatmul.f32.gmra.mxu0 %v842
        %v1073 = vpop.f32.mrf.mxu0
        %v1074 = vadd.f32 0.0, %v1073
        %1075 = vmatmul.f32.gmra.mxu0 %v845
        %v1076 = vpop.f32.mrf.mxu0
        %v1077 = vadd.f32 0.0, %v1076
        %1078 = vmatmul.f32.gmra.mxu0 %v848
        %v1079 = vpop.f32.mrf.mxu0
        %v1080 = vadd.f32 0.0, %v1079
        %1081 = vmatmul.f32.gmra.mxu0 %v851
        %v1082 = vpop.f32.mrf.mxu0
        %v1083 = vadd.f32 0.0, %v1082
        %1084 = vdwg.mxu0
        %v1085 = vmul.f32 %v736, %v871
        %v1086 = vmul.f32 %v737, %v874
        %v1087 = vmul.f32 %v738, %v877
        %v1088 = vmul.f32 %v739, %v880
        %v1089 = vmul.f32 %v740, %v900
        %v1090 = vmul.f32 %v741, %v903
        %v1091 = vmul.f32 %v742, %v906
        %v1092 = vmul.f32 %v743, %v909
        %v1093 = vmul.f32 %v744, %v929
        %v1094 = vmul.f32 %v745, %v932
        %v1095 = vmul.f32 %v746, %v935
        %v1096 = vmul.f32 %v747, %v938
        %v1097 = vmul.f32 %v748, %v958
        %v1098 = vmul.f32 %v749, %v961
        %v1099 = vmul.f32 %v750, %v964
        %v1100 = vmul.f32 %v751, %v967
        %v1101 = vmul.f32 %v752, %v987
        %v1102 = vmul.f32 %v753, %v990
        %v1103 = vmul.f32 %v754, %v993
        %v1104 = vmul.f32 %v755, %v996
        %v1105 = vmul.f32 %v756, %v1016
        %v1106 = vmul.f32 %v757, %v1019
        %v1107 = vmul.f32 %v758, %v1022
        %v1108 = vmul.f32 %v759, %v1025
        %v1109 = vmul.f32 %v760, %v1045
        %v1110 = vmul.f32 %v761, %v1048
        %v1111 = vmul.f32 %v762, %v1051
        %v1112 = vmul.f32 %v763, %v1054
        %v1113 = vmul.f32 %v764, %v1074
        %v1114 = vmul.f32 %v765, %v1077
        %v1115 = vmul.f32 %v766, %v1080
        %v1116 = vmul.f32 %v767, %v1083
        %v1117 = vadd.f32 %v1085, %v1086
        %v1118 = vadd.f32 %v1117, %v1087
        %v1119 = vadd.f32 %v1118, %v1088
        %v1120 = vrot.slane %v1119, 4
        %v1121 = vadd.f32 %v1119, %v1120
        %v1122 = vrot.slane %v1121, 2
        %v1123 = vadd.f32 %v1121, %v1122
        %v1124 = vrot.slane %v1123, 1
        %v1125 = vadd.f32 %v1123, %v1124
        %v1126 = vadd.f32 %v1089, %v1090
        %v1127 = vadd.f32 %v1126, %v1091
        %v1128 = vadd.f32 %v1127, %v1092
        %v1129 = vrot.slane %v1128, 4
        %v1130 = vadd.f32 %v1128, %v1129
        %v1131 = vrot.slane %v1130, 2
        %v1132 = vadd.f32 %v1130, %v1131
        %v1133 = vrot.slane %v1132, 1
        %v1134 = vadd.f32 %v1132, %v1133
        %v1135 = vadd.f32 %v1093, %v1094
        %v1136 = vadd.f32 %v1135, %v1095
        %v1137 = vadd.f32 %v1136, %v1096
        %v1138 = vrot.slane %v1137, 4
        %v1139 = vadd.f32 %v1137, %v1138
        %v1140 = vrot.slane %v1139, 2
        %v1141 = vadd.f32 %v1139, %v1140
        %v1142 = vrot.slane %v1141, 1
        %v1143 = vadd.f32 %v1141, %v1142
        %v1144 = vadd.f32 %v1097, %v1098
        %v1145 = vadd.f32 %v1144, %v1099
        %v1146 = vadd.f32 %v1145, %v1100
        %v1147 = vrot.slane %v1146, 4
        %v1148 = vadd.f32 %v1146, %v1147
        %v1149 = vrot.slane %v1148, 2
        %v1150 = vadd.f32 %v1148, %v1149
        %v1151 = vrot.slane %v1150, 1
        %v1152 = vadd.f32 %v1150, %v1151
        %v1153 = vadd.f32 %v1101, %v1102
        %v1154 = vadd.f32 %v1153, %v1103
        %v1155 = vadd.f32 %v1154, %v1104
        %v1156 = vrot.slane %v1155, 4
        %v1157 = vadd.f32 %v1155, %v1156
        %v1158 = vrot.slane %v1157, 2
        %v1159 = vadd.f32 %v1157, %v1158
        %v1160 = vrot.slane %v1159, 1
        %v1161 = vadd.f32 %v1159, %v1160
        %v1162 = vadd.f32 %v1105, %v1106
        %v1163 = vadd.f32 %v1162, %v1107
        %v1164 = vadd.f32 %v1163, %v1108
        %v1165 = vrot.slane %v1164, 4
        %v1166 = vadd.f32 %v1164, %v1165
        %v1167 = vrot.slane %v1166, 2
        %v1168 = vadd.f32 %v1166, %v1167
        %v1169 = vrot.slane %v1168, 1
        %v1170 = vadd.f32 %v1168, %v1169
        %v1171 = vadd.f32 %v1109, %v1110
        %v1172 = vadd.f32 %v1171, %v1111
        %v1173 = vadd.f32 %v1172, %v1112
        %v1174 = vrot.slane %v1173, 4
        %v1175 = vadd.f32 %v1173, %v1174
        %v1176 = vrot.slane %v1175, 2
        %v1177 = vadd.f32 %v1175, %v1176
        %v1178 = vrot.slane %v1177, 1
        %v1179 = vadd.f32 %v1177, %v1178
        %v1180 = vadd.f32 %v1113, %v1114
        %v1181 = vadd.f32 %v1180, %v1115
        %v1182 = vadd.f32 %v1181, %v1116
        %v1183 = vrot.slane %v1182, 4
        %v1184 = vadd.f32 %v1182, %v1183
        %v1185 = vrot.slane %v1184, 2
        %v1186 = vadd.f32 %v1184, %v1185
        %v1187 = vrot.slane %v1186, 1
        %v1188 = vadd.f32 %v1186, %v1187
        %v1189 = vmax.f32 %v1125, %v1161
        %v1190 = vmax.f32 %v1134, %v1170
        %v1191 = vmax.f32 %v1143, %v1179
        %v1192 = vmax.f32 %v1152, %v1188
        %v1193 = vmax.f32 %v1189, %v1190
        %v1194 = vmax.f32 %v1191, %v1192
        %v1195 = vmax.f32 %v1193, %v1194
        %v1196 = vsub.f32 %v1125, %v1195
        %v1197 = vsub.f32 %v1134, %v1195
        %v1198 = vsub.f32 %v1143, %v1195
        %v1199 = vsub.f32 %v1152, %v1195
        %v1200 = vsub.f32 %v1161, %v1195
        %v1201 = vsub.f32 %v1170, %v1195
        %v1202 = vsub.f32 %v1179, %v1195
        %v1203 = vsub.f32 %v1188, %v1195
        %v1204 = vmul.f32 %v1196, 1.442695
        %v1205 = vpow.pop %v1204
        %v1206 = vmul.f32 %v1197, 1.442695
        %v1207 = vpow.pop %v1206
        %v1208 = vmul.f32 %v1198, 1.442695
        %v1209 = vpow.pop %v1208
        %v1210 = vmul.f32 %v1199, 1.442695
        %v1211 = vpow.pop %v1210
        %v1212 = vmul.f32 %v1200, 1.442695
        %v1213 = vpow.pop %v1212
        %v1214 = vmul.f32 %v1201, 1.442695
        %v1215 = vpow.pop %v1214
        %v1216 = vmul.f32 %v1202, 1.442695
        %v1217 = vpow.pop %v1216
        %v1218 = vmul.f32 %v1203, 1.442695
        %v1219 = vpow.pop %v1218
        %v1228 = vrot.slane %v1207, 7
        %vm1229 = vcmask 1041409
        %v1230 = vsel %vm1229, %v1228, %v1205
        %v1231 = vrot.slane %v1209, 6
        %vm1232 = vcmask 1042434
        %v1233 = vsel %vm1232, %v1231, %v1230
        %v1234 = vrot.slane %v1211, 5
        %vm1235 = vcmask 1043459
        %v1236 = vsel %vm1235, %v1234, %v1233
        %v1237 = vrot.slane %v1213, 4
        %vm1238 = vcmask 1044484
        %v1239 = vsel %vm1238, %v1237, %v1236
        %v1240 = vrot.slane %v1215, 3
        %vm1241 = vcmask 1045509
        %v1242 = vsel %vm1241, %v1240, %v1239
        %v1243 = vrot.slane %v1217, 2
        %vm1244 = vcmask 1046534
        %v1245 = vsel %vm1244, %v1243, %v1242
        %v1246 = vrot.slane %v1219, 1
        %vm1247 = vcmask 1047559
        %v1248 = vsel %vm1247, %v1246, %v1245
        %v1250 = vrot.slane %v1248, 4
        %v1251 = vadd.f32 %v1248, %v1250
        %v1252 = vrot.slane %v1251, 2
        %v1253 = vadd.f32 %v1251, %v1252
        %v1254 = vrot.slane %v1253, 1
        %v1255 = vadd.f32 %v1253, %v1254
        %v1256 = vperm.slane %v1205, 0
        %v1257 = vperm.slane %v1207, 0
        %v1258 = vperm.slane %v1209, 0
        %v1259 = vperm.slane %v1211, 0
        %v1260 = vperm.slane %v1213, 0
        %v1261 = vperm.slane %v1215, 0
        %v1262 = vperm.slane %v1217, 0
        %v1263 = vperm.slane %v1219, 0
        %v1264 = vmul.f32 %v1256, %v800
        %v1265 = vmul.f32 %v1256, %v801
        %v1266 = vmul.f32 %v1256, %v802
        %v1267 = vmul.f32 %v1256, %v803
        %v1268 = vmul.f32 %v1257, %v804
        %v1269 = vmul.f32 %v1257, %v805
        %v1270 = vmul.f32 %v1257, %v806
        %v1271 = vmul.f32 %v1257, %v807
        %v1272 = vmul.f32 %v1258, %v808
        %v1273 = vmul.f32 %v1258, %v809
        %v1274 = vmul.f32 %v1258, %v810
        %v1275 = vmul.f32 %v1258, %v811
        %v1276 = vmul.f32 %v1259, %v812
        %v1277 = vmul.f32 %v1259, %v813
        %v1278 = vmul.f32 %v1259, %v814
        %v1279 = vmul.f32 %v1259, %v815
        %v1280 = vmul.f32 %v1260, %v816
        %v1281 = vmul.f32 %v1260, %v817
        %v1282 = vmul.f32 %v1260, %v818
        %v1283 = vmul.f32 %v1260, %v819
        %v1284 = vmul.f32 %v1261, %v820
        %v1285 = vmul.f32 %v1261, %v821
        %v1286 = vmul.f32 %v1261, %v822
        %v1287 = vmul.f32 %v1261, %v823
        %v1288 = vmul.f32 %v1262, %v824
        %v1289 = vmul.f32 %v1262, %v825
        %v1290 = vmul.f32 %v1262, %v826
        %v1291 = vmul.f32 %v1262, %v827
        %v1292 = vmul.f32 %v1263, %v828
        %v1293 = vmul.f32 %v1263, %v829
        %v1294 = vmul.f32 %v1263, %v830
        %v1295 = vmul.f32 %v1263, %v831
        %v1296 = vadd.f32 %v1264, %v1268
        %v1297 = vadd.f32 %v1296, %v1272
        %v1298 = vadd.f32 %v1297, %v1276
        %v1299 = vadd.f32 %v1298, %v1280
        %v1300 = vadd.f32 %v1299, %v1284
        %v1301 = vadd.f32 %v1300, %v1288
        %v1302 = vadd.f32 %v1301, %v1292
        %v1303 = vadd.f32 %v1265, %v1269
        %v1304 = vadd.f32 %v1303, %v1273
        %v1305 = vadd.f32 %v1304, %v1277
        %v1306 = vadd.f32 %v1305, %v1281
        %v1307 = vadd.f32 %v1306, %v1285
        %v1308 = vadd.f32 %v1307, %v1289
        %v1309 = vadd.f32 %v1308, %v1293
        %v1310 = vadd.f32 %v1266, %v1270
        %v1311 = vadd.f32 %v1310, %v1274
        %v1312 = vadd.f32 %v1311, %v1278
        %v1313 = vadd.f32 %v1312, %v1282
        %v1314 = vadd.f32 %v1313, %v1286
        %v1315 = vadd.f32 %v1314, %v1290
        %v1316 = vadd.f32 %v1315, %v1294
        %v1317 = vadd.f32 %v1267, %v1271
        %v1318 = vadd.f32 %v1317, %v1275
        %v1319 = vadd.f32 %v1318, %v1279
        %v1320 = vadd.f32 %v1319, %v1283
        %v1321 = vadd.f32 %v1320, %v1287
        %v1322 = vadd.f32 %v1321, %v1291
        %v1323 = vadd.f32 %v1322, %v1295
        %v1325 = vsel %vm840, %v836, 0
        %v1328 = vsel %vm840, %v837, 0
        %v1331 = vsel %vm840, %v838, 0
        %v1334 = vsel %vm840, %v839, 0
        %1336 = vmatpush.msra.mxu0 0.0
        %1337 = vmatpush.msra.mxu0 0.0
        %1338 = vmatpush.msra.mxu0 0.0
        %1339 = vmatpush.msra.mxu0 0.0
        %1340 = vmatpush.msra.mxu0 0.0
        %1341 = vmatpush.msra.mxu0 0.0
        %1342 = vmatpush.msra.mxu0 0.0
        %1343 = vmatpush.msra.mxu0 0.0
        %1344 = vmatpush.msra.mxu0 0.0
        %1345 = vmatpush.msra.mxu0 0.0
        %1346 = vmatpush.msra.mxu0 0.0
        %1347 = vmatpush.msra.mxu0 0.0
        %1348 = vmatpush.msra.mxu0 %v1323
        %1349 = vmatpush.msra.mxu0 %v1316
        %1350 = vmatpush.msra.mxu0 %v1309
        %1351 = vmatpush.msra.mxu0 %v1302
        %1352 = vmatmul.f32.gmra.mxu0 %v1325
        %v1353 = vpop.f32.mrf.mxu0
        %v1354 = vadd.f32 0.0, %v1353
        %1355 = vmatmul.f32.gmra.mxu0 %v1328
        %v1356 = vpop.f32.mrf.mxu0
        %v1357 = vadd.f32 0.0, %v1356
        %1358 = vmatmul.f32.gmra.mxu0 %v1331
        %v1359 = vpop.f32.mrf.mxu0
        %v1360 = vadd.f32 0.0, %v1359
        %1361 = vmatmul.f32.gmra.mxu0 %v1334
        %v1362 = vpop.f32.mrf.mxu0
        %v1363 = vadd.f32 0.0, %v1362
        %1364 = vdwg.mxu0
        %v1365 = vrcp.pop %v1255
        %v1366 = vmul.f32 %v1255, %v1365
        %v1367 = vsub.f32 1.0, %v1366
        %v1368 = vmul.f32 %v1365, %v1367
        %v1369 = vadd.f32 %v1365, %v1368
        %vm1370 = vweird.f32 %v1255
        %vm1371 = vweird.f32 %v1365
        %vm1372 = vmor %vm1370, %vm1371
        %v1373 = vsel %vm1372, %v1365, %v1369
        %v1374 = vand.u32 2147483647, %v1255
        %vm1375 = vcmp.eq.f32.partialorder %v1374, 8.507059e+37
        %v1376 = vand.u32 %v1255, 2147483648
        %v1377 = vor.u32 1.1754944e-38, %v1376
        %v1378 = vsel %vm1375, %v1377, %v1373
        %v1379 = vperm.slane %v1378, 0
        %v1380 = vmul.f32 %v1354, %v1379
        %v1381 = vmul.f32 %v1357, %v1379
        %v1382 = vmul.f32 %v1360, %v1379
        %v1383 = vmul.f32 %v1363, %v1379
        %1384 = vst [vmem:[%s735] sm:$0xff] %v1380
        %1385 = vst [vmem:[%s735 + $0x8] sm:$0xff] %v1381
        %1386 = vst [vmem:[%s735 + $0x10] sm:$0xff] %v1382
        %1387 = vst [vmem:[%s735 + $0x18] sm:$0xff] %v1383
        %s1388 = sand.u32 %s144, 1
        %s1389 = sand.u32 %s144, 1
        %s1390 = smul.addr %s1389, 32
        %s1391 = scalar_lea.vmem [#allocation5], %s1390
        // Predicated region
        $region155: #{gkt_multi_head_attention.1} parent=141 // pred_check
          %p1392 = pneg %p154
        $region156: #{gkt_multi_head_attention.1} parent=141 // pred_check_branch
          %1394 = sbr.rel (%p1392) target = $region158
        $region157: #{gkt_multi_head_attention.1} parent=141 // pred_region
          %s1395 = smul.addr %s16, 8
          %s1396 = scalar_lea.vmem %s5, %s1395
          // Predicated region
          $region159: #{gkt_multi_head_attention.1} parent=157 // pred_check
            _
          $region160: #{gkt_multi_head_attention.1} parent=157 // pred_check_branch
            %1398 = sbr.rel (0) target = $region162
          $region161: #{gkt_multi_head_attention.1} parent=157 // pred_region
            // Predicated region
            $region163: #{gkt_multi_head_attention.1} parent=161 // pred_check
              _
            $region164: #{gkt_multi_head_attention.1} parent=161 // pred_check_branch
              %1400 = sbr.rel (0) target = $region166
            $region165: #{gkt_multi_head_attention.1} parent=161 // pred_region
              // Predicated region
              $region178: #{gkt_multi_head_attention.1} parent=165 // pred_check
                _
              $region179: #{gkt_multi_head_attention.1} parent=165 // pred_check_branch
                %1422 = sbr.rel (0) target = $region181
              $region180: #{gkt_multi_head_attention.1} parent=165 // pred_region
                loop: start=0, step=1, limit=1
                $region182: #{gkt_multi_head_attention.1} parent=180 // loop_pre_header
                  _
                $region183: #{gkt_multi_head_attention.1} parent=180 // loop_header
                  %s1424 = sphi 0, %s1428
                  %p1425 = scmp.ge.s32.totalorder %s1424, 1
                  %s1429 = sphi %s1391, %s1391
                  %s1430 = sphi %s1396, %s1396
                $region184: #{gkt_multi_head_attention.1} parent=180 // loop_header_branch
                  %1427 = sbr.rel (%p1425) target = $region188
                $region185: #{gkt_multi_head_attention.1} parent=180 // loop_body
                  %v1431 = vld [vmem:[%s1429] sm:$0xff]
                  %1432 = vst [vmem:[%s1430] sm:$0xff] %v1431
                  %v1433 = vld [vmem:[%s1429 + $0x8] sm:$0xff]
                  %1434 = vst [vmem:[%s1430 + $0x10] sm:$0xff] %v1433
                  %v1435 = vld [vmem:[%s1429 + $0x10] sm:$0xff]
                  %1436 = vst [vmem:[%s1430 + $0x20] sm:$0xff] %v1435
                  %v1437 = vld [vmem:[%s1429 + $0x18] sm:$0xff]
                  %1438 = vst [vmem:[%s1430 + $0x30] sm:$0xff] %v1437
                $region186: #{gkt_multi_head_attention.1} parent=180 // loop_footer
                  %s1428 = sadd.s32 1, %s1424
                $region187: #{gkt_multi_head_attention.1} parent=180 // loop_footer_branch
                  %1423 = sbr.rel target = $region183
                $region188: #{gkt_multi_head_attention.1} parent=180 // loop_exit
                  _
              $region181: #{gkt_multi_head_attention.1} parent=165 // pred_fallthru
                _
              // Predicated region
              $region189: #{gkt_multi_head_attention.1} parent=165 // pred_check
                _
              $region190: #{gkt_multi_head_attention.1} parent=165 // pred_check_branch
                %1440 = sbr.rel target = $region192
              $region191: #{gkt_multi_head_attention.1} parent=165 // pred_region
                _
              $region192: #{gkt_multi_head_attention.1} parent=165 // pred_fallthru
                _
            $region166: #{gkt_multi_head_attention.1} parent=161 // pred_fallthru
              _
            // Predicated region
            $region167: #{gkt_multi_head_attention.1} parent=161 // pred_check
              _
            $region168: #{gkt_multi_head_attention.1} parent=161 // pred_check_branch
              %1402 = sbr.rel target = $region170
            $region169: #{gkt_multi_head_attention.1} parent=161 // pred_region
              %s1404 = ssub.s32 256, 1
              loop: start=0, step=1, limit=1
              $region171: #{gkt_multi_head_attention.1} parent=169 // loop_pre_header
                _
              $region172: #{gkt_multi_head_attention.1} parent=169 // loop_header
                %s1406 = sphi 0, %s1410
                %p1407 = scmp.ge.s32.totalorder %s1406, 1
                %s1411 = sphi %s1391, %s1391
                %s1412 = sphi %s1396, %s1396
              $region173: #{gkt_multi_head_attention.1} parent=169 // loop_header_branch
                %1409 = sbr.rel (%p1407) target = $region177
              $region174: #{gkt_multi_head_attention.1} parent=169 // loop_body
                %v1413 = vld [vmem:[%s1411] sm:%s1404]
                %1414 = vst [vmem:[%s1412] sm:%s1404] %v1413
                %v1415 = vld [vmem:[%s1411 + $0x8] sm:%s1404]
                %1416 = vst [vmem:[%s1412 + $0x10] sm:%s1404] %v1415
                %v1417 = vld [vmem:[%s1411 + $0x10] sm:%s1404]
                %1418 = vst [vmem:[%s1412 + $0x20] sm:%s1404] %v1417
                %v1419 = vld [vmem:[%s1411 + $0x18] sm:%s1404]
                %1420 = vst [vmem:[%s1412 + $0x30] sm:%s1404] %v1419
              $region175: #{gkt_multi_head_attention.1} parent=169 // loop_footer
                %s1410 = sadd.s32 1, %s1406
              $region176: #{gkt_multi_head_attention.1} parent=169 // loop_footer_branch
                %1405 = sbr.rel target = $region172
              $region177: #{gkt_multi_head_attention.1} parent=169 // loop_exit
                _
            $region170: #{gkt_multi_head_attention.1} parent=161 // pred_fallthru
              _
          $region162: #{gkt_multi_head_attention.1} parent=157 // pred_fallthru
            _
          %1441 = vnop
        $region158: #{gkt_multi_head_attention.1} parent=141 // pred_fallthru
          _
      $region142: #{gkt_multi_head_attention.1} parent=5 // pred_fallthru
        _
      %p1442 = scmp.le.s32.totalorder 2, %s11
      // Predicated region
      $region193: #{gkt_multi_head_attention.1} parent=5 // pred_check
        %p1443 = pneg %p1442
      $region194: #{gkt_multi_head_attention.1} parent=5 // pred_check_branch
        %1445 = sbr.rel (%p1443) target = $region196
      $region195: #{gkt_multi_head_attention.1} parent=5 // pred_region
        %s1446 = ssub.s32 %s11, 2
        // Predicated region
        $region197: #{gkt_multi_head_attention.1} parent=195 // pred_check
          %p1447 = pneg %p160
        $region198: #{gkt_multi_head_attention.1} parent=195 // pred_check_branch
          %1449 = sbr.rel (%p1447) target = $region200
        $region199: #{gkt_multi_head_attention.1} parent=195 // pred_region
          %s1450 = sand.u32 %s145, 1
          %s1451 = sand.u32 %s145, 1
          %s1452 = smul.addr %s1451, 32
          %s1453 = scalar_lea.vmem [#allocation5], %s1452
        $region200: #{gkt_multi_head_attention.1} parent=195 // pred_fallthru
          _
      $region196: #{gkt_multi_head_attention.1} parent=5 // pred_fallthru
        _
    $region6: #{gkt_multi_head_attention.1} parent=1 // loop_footer
      %s15 = sadd.s32 1, %s11
    $region7: #{gkt_multi_head_attention.1} parent=1 // loop_footer_branch
      %10 = sbr.rel target = $region3
    $region8: #{gkt_multi_head_attention.1} parent=1 // loop_exit
      _

</llo_original>
